<compile_context>
chip_gen: v7x
topology: tpu7x:2x2x1
jax: 0.10.0
libtpu: 0.0.40
codegen_flags: <defaults>
</compile_context>

<pallas_src>
import functools
import math

import jax
import jax.numpy as jnp
from jax import lax
from jax.experimental import pallas as pl
from jax.experimental.pallas import tpu as pltpu

MIN_NORM = 1e-15
PROJ_EPS = 4e-3          # hyptorch BALL_EPS[float32]
ARTANH_CLAMP = 1e-5      # hyptorch Artanh clamp


def _artanh(x):
    x = jnp.clip(x, -1.0 + ARTANH_CLAMP, 1.0 - ARTANH_CLAMP)
    return 0.5 * (jnp.log1p(x) - jnp.log1p(-x))


def _round_up(v, m):
    return (v + m - 1) // m * m


def _vmem_capacity():
    try:
        return int(pltpu.get_tpu_info().vmem_capacity_bytes)
    except Exception:
        return 64 * 1024 * 1024          # conservative (v7x-sized) fallback


def _mxu_align():
    try:
        kind = jax.devices()[0].device_kind.lower()
    except Exception:
        return 128
    return 256 if any(t in kind for t in ("v6", "v7", "7x")) else 128


def _pad_dim(d, align):
    # 256-alignment only when it is cheap (dim already exceeds one 128 chunk).
    if align > 128 and d > 128:
        return _round_up(d, align)
    return _round_up(d, 128)


def _sublane(dtype):
    return {4: 8, 2: 16, 1: 32}.get(jnp.dtype(dtype).itemsize, 8)


def _maybe_single_buffered(shape, index_map, single_buffer):
    """BlockSpec that is single-buffered when the operand is grid-invariant."""
    if single_buffer:
        try:
            return pl.BlockSpec(shape, index_map, pipeline_mode=pl.Buffered(1))
        except (TypeError, AttributeError):
            pass
    return pl.BlockSpec(shape, index_map)


def hyp_linear_kernel(x_ref, w_ref, hb_ref, hbc_ref, y2_ref, o_ref,
                      acc_ref, xsq_ref, *, c, add_c, nk, mm_dtype):
    # Static python constants.
    c = float(c)
    add_c = float(add_c)
    sqrt_c = math.sqrt(c)
    inv_c = 1.0 / c
    maxnorm = (1.0 - PROJ_EPS) / sqrt_c

    k = pl.program_id(1)

    x_nat = x_ref[...]                                          # (TB, TK) native dtype
    x_f32 = x_nat.astype(jnp.float32)
    xsq_part = jnp.sum(x_f32 * x_f32, axis=-1, keepdims=True)   # (TB, 1)

    # MXU: partial mx = x_tile @ W_tile (weight is pre-transposed to (K, N)).
    mx_part = lax.dot_general(
        x_nat.astype(mm_dtype), w_ref[...],
        dimension_numbers=(((1,), (0,)), ((), ())),
        preferred_element_type=jnp.float32)                     # (TB, N) f32

    def epilogue(mx, x_sq):
        hb = hb_ref[...]                                        # (1, N) f32 = expmap0(bias, c)
        y2 = y2_ref[...]                                        # (1, 1) f32 = ||hb||^2

        # ---- mobius_matvec scale -------------------------------------------
        x_norm = jnp.maximum(jnp.sqrt(x_sq), MIN_NORM)
        mx_sq = jnp.sum(mx * mx, axis=-1, keepdims=True)
        mx_norm = jnp.maximum(jnp.sqrt(mx_sq), MIN_NORM)
        all_zero = jnp.max(jnp.abs(mx), axis=-1, keepdims=True) == 0.0

        t = mx_norm * pl.reciprocal(x_norm, approx=True) * _artanh(sqrt_c * x_norm)
        tanh_t = jnp.tanh(t)
        mv_scale = jnp.where(all_zero, 0.0, tanh_t / (mx_norm * sqrt_c))   # (TB,1)
        x2 = jnp.where(all_zero, 0.0, tanh_t * tanh_t * inv_c)             # ||mv||^2

        # <mx, hb> on the MXU (hb lives in column 0 of hbc, other columns are 0).
        mxhb = lax.dot_general(
            mx, hbc_ref[...],
            dimension_numbers=(((1,), (0,)), ((), ())),
            preferred_element_type=jnp.float32)[:, 0:1]                    # (TB, 1)
        xy = mv_scale * mxhb                                               # <mv, hb>

        # ---- mobius_add(mv, hb) with pmath's default curvature add_c -------
        two_cxy = 2.0 * add_c * xy
        a_coef = 1.0 + two_cxy + add_c * y2
        b_coef = 1.0 - add_c * x2
        denom = 1.0 + two_cxy + (add_c * add_c) * x2 * y2
        inv_denom = pl.reciprocal(jnp.maximum(denom, MIN_NORM), approx=True)
        s_x = a_coef * mv_scale * inv_denom                                # scale on mx
        s_b = b_coef * inv_denom                                           # scale on hb

        # ---- project(., c) onto the Poincare ball ---------------------------
        added_sq = s_x * s_x * mx_sq + 2.0 * s_x * s_b * mxhb + s_b * s_b * y2
        norm = jnp.maximum(jnp.sqrt(jnp.maximum(added_sq, 0.0)), MIN_NORM)
        proj_scale = jnp.where(norm > maxnorm, maxnorm / norm, 1.0)

        # ---- single fused (TB, N) pass: out = f_x * mx + f_b * hb ----------
        f_x = proj_scale * s_x
        f_b = proj_scale * s_b
        o_ref[...] = (f_x * mx + f_b * hb).astype(o_ref.dtype)

    if nk == 1:
        epilogue(mx_part, xsq_part)
    else:
        @pl.when(k == 0)
        def _():
            acc_ref[...] = mx_part
            xsq_ref[...] = xsq_part

        @pl.when(jnp.logical_and(k > 0, k < nk - 1))
        def _():
            acc_ref[...] = acc_ref[...] + mx_part
            xsq_ref[...] = xsq_ref[...] + xsq_part

        @pl.when(k == nk - 1)
        def _():
            epilogue(acc_ref[...] + mx_part, xsq_ref[...] + xsq_part)


def prepare_hyp_linear(weight, bias, c, *, matmul_dtype=jnp.bfloat16):
    """One-time parameter prep: pad + transpose + cast the weight, expmap0(bias)."""
    N, K = weight.shape
    align = _mxu_align()
    K_pad = _pad_dim(K, align)
    N_pad = _pad_dim(N, align)

    wT = jnp.pad(weight.astype(matmul_dtype).T,
                 ((0, K_pad - K), (0, N_pad - N)))              # (K_pad, N_pad)

    c_f = float(c)
    sqrt_c = math.sqrt(c_f)
    if bias is None:
        hb = jnp.zeros((N_pad,), jnp.float32)
        y2 = jnp.zeros((1, 1), jnp.float32)
    else:
        b = bias.astype(jnp.float32)
        b_norm = jnp.maximum(jnp.sqrt(jnp.sum(b * b)), MIN_NORM)
        th = jnp.tanh(sqrt_c * b_norm)
        hb = jnp.pad((th / (sqrt_c * b_norm)) * b, (0, N_pad - N))
        y2 = ((th * th) / c_f).reshape(1, 1)                    # ||expmap0(bias)||^2

    hb_row = hb.reshape(1, N_pad)
    hb_col = jnp.zeros((N_pad, 128), jnp.float32).at[:, 0].set(hb)

    return dict(wT=wT, hb_row=hb_row, hb_col=hb_col, y2=y2,
                c=c_f, K=K, N=N, K_pad=K_pad, N_pad=N_pad)


def hyp_linear_apply(x, params, *, block_b=None, add_c=1.0):
    """x: (..., K). `params` comes from prepare_hyp_linear (done once per layer)."""
    orig_shape = x.shape
    if x.ndim != 2:
        x = x.reshape(-1, orig_shape[-1])
    B, K = x.shape
    assert K == params["K"]
    K_pad, N_pad, N = params["K_pad"], params["N_pad"], params["N"]
    wT = params["wT"]

    x_bytes = jnp.dtype(x.dtype).itemsize
    w_bytes = jnp.dtype(wT.dtype).itemsize
    out_dtype = x.dtype
    out_bytes = jnp.dtype(out_dtype).itemsize

    cap = _vmem_capacity()
    usable = int(cap * 0.85)
    if block_b is None:
        block_b = 512 if cap >= 96 * 1024 * 1024 else 256   # bigger tiles on 128MiB chips

    # Batch tile: sublane-aligned, and >= 2 grid steps when B allows (v7x megacore).
    sub = _sublane(x.dtype)
    b_ceil = _round_up(B, sub)
    if b_ceil >= 2 * sub:
        block_b = min(block_b, _round_up(-(-B // 2), sub))
    block_b = _round_up(max(sub, min(block_b, b_ceil)), sub)

    def vmem_est(bb, bk):
        single_k = bk >= K_pad
        est = ((1 if single_k else 2) * bk * N_pad * w_bytes   # weight tile(s)
               + 2 * bb * bk * x_bytes                         # x tiles (double-buffered)
               + 2 * bb * N_pad * out_bytes                    # out tiles
               + (0 if single_k else bb * N_pad * 4)           # f32 matmul accumulator
               + bb * 128 * 4                                  # ||x||^2 accumulator
               + (N_pad + 128 * N_pad + 128) * 4)              # hb_row / hb_col / y2
        return est + (2 << 20)                                 # compiler headroom

    def pick_block_k(bb):
        for bk in range(K_pad, 127, -128):                     # divisors of K_pad, desc.
            if K_pad % bk == 0 and vmem_est(bb, bk) <= usable:
                return bk
        return 128

    block_k = pick_block_k(block_b)
    while vmem_est(block_b, block_k) > usable and block_b > sub:
        block_b = _round_up(max(sub, block_b // 2), sub)
        block_k = pick_block_k(block_b)
    # TODO(synk): if even (block_b=sublane, block_k=128) exceeds VMEM (enormous N),
    #             an additional N-split with a two-pass reduction would be needed.

    B_pad = _round_up(B, block_b)
    nk = K_pad // block_k
    n_bt = B_pad // block_b

    if (B_pad, K_pad) == (B, K):
        xp = x
    else:
        xp = jnp.pad(x, ((0, B_pad - B), (0, K_pad - K)))

    kernel = functools.partial(hyp_linear_kernel, c=params["c"], add_c=add_c,
                               nk=nk, mm_dtype=wT.dtype)

    est = vmem_est(block_b, block_k)
    vmem_limit = int(max(32 << 20, min(est + (4 << 20), int(cap * 0.9))))

    cost = pl.CostEstimate(
        flops=2 * B_pad * K_pad * N_pad + 2 * B_pad * N_pad * 128,
        transcendentals=6 * B_pad,
        bytes_accessed=(B_pad * K_pad * x_bytes
                        + (1 if nk == 1 else n_bt) * K_pad * N_pad * w_bytes
                        + B_pad * N_pad * out_bytes))

    if nk > 1:
        scratch = [pltpu.VMEM((block_b, N_pad), jnp.float32),
                   pltpu.VMEM((block_b, 1), jnp.float32)]
    else:  # accumulators unused when K is not split -> tiny dummies
        scratch = [pltpu.VMEM((8, 128), jnp.float32),
                   pltpu.VMEM((8, 1), jnp.float32)]

    def build(single_buffer):
        w_invariant = single_buffer and nk == 1
        in_specs = [
            pl.BlockSpec((block_b, block_k), lambda i, k: (i, k)),            # x tile
            _maybe_single_buffered((block_k, N_pad), lambda i, k: (k, 0),
                                   w_invariant),                              # weight
            _maybe_single_buffered((1, N_pad), lambda i, k: (0, 0),
                                   single_buffer),                            # expmap0(bias)
            _maybe_single_buffered((N_pad, 128), lambda i, k: (0, 0),
                                   single_buffer),                            # bias column (MXU)
            _maybe_single_buffered((1, 1), lambda i, k: (0, 0),
                                   single_buffer),                            # ||hb||^2
        ]
        return pl.pallas_call(
            kernel,
            out_shape=jax.ShapeDtypeStruct((B_pad, N_pad), out_dtype),
            grid_spec=pltpu.PrefetchScalarGridSpec(
                num_scalar_prefetch=0,
                grid=(n_bt, nk),
                in_specs=in_specs,
                out_specs=pl.BlockSpec((block_b, N_pad), lambda i, k: (i, 0)),
                scratch_shapes=scratch),
            compiler_params=pltpu.CompilerParams(
                dimension_semantics=("parallel", "arbitrary"),
                vmem_limit_bytes=vmem_limit),
            cost_estimate=cost,
        )

    args = (xp, wT, params["hb_row"], params["hb_col"], params["y2"])
    try:
        out = build(True)(*args)
    except Exception:
        # Fallback for JAX builds that reject single-buffered pipeline_mode.
        out = build(False)(*args)

    if (B_pad, N_pad) != (B, N):
        out = out[:B, :N]
    return out.reshape(orig_shape[:-1] + (N,))


def hyp_linear(x, weight, bias, c, *, block_b=None, add_c=1.0,
               matmul_dtype=jnp.bfloat16):
    """Convenience one-shot wrapper. Prefer prepare_hyp_linear + hyp_linear_apply
    for repeated calls (avoids re-padding / re-casting the weight every time)."""
    params = prepare_hyp_linear(weight, bias, c, matmul_dtype=matmul_dtype)
    return hyp_linear_apply(x, params, block_b=block_b, add_c=add_c)


def init_hyp_linear_params(key, in_features, out_features):
    """Deterministic re-implementation of HypLinear.reset_parameters."""
    k_w, k_b = jax.random.split(key)
    fan_in = in_features
    w_bound = math.sqrt(6.0 / ((1.0 + 5.0) * fan_in))   # kaiming_uniform(a=sqrt(5))
    weight = jax.random.uniform(
        k_w, (out_features, in_features), jnp.float32, -w_bound, w_bound)
    b_bound = 1.0 / math.sqrt(fan_in)
    bias = jax.random.uniform(
        k_b, (out_features,), jnp.float32, -b_bound, b_bound)
    return weight, bias


if __name__ == "__main__":
    key = jax.random.PRNGKey(0)
    k_x, k_p = jax.random.split(key)

    B, K, N = 16, 32, 64
    c = 1.0

    # Inputs must lie (roughly) inside the Poincare ball; scale them down.
    x = 0.05 * jax.random.normal(k_x, (B, K), jnp.float32)
    weight, bias = init_hyp_linear_params(k_p, K, N)

    params = prepare_hyp_linear(weight, bias, c)        # one-time weight/bias prep
    out = hyp_linear_apply(x, params)
    out = jax.block_until_ready(out)

    assert out.shape == (B, N) and out.dtype == x.dtype
    assert bool(jnp.all(jnp.isfinite(out)))
    print("KERNEL_OK")
</pallas_src>

<mosaic_0001>
module attributes {stable_mosaic.version = 11 : i64} {
  func.func @hyp_linear_kernel(%arg0: i32, %arg1: i32, %arg2: memref<8x128xf32, #tpu.memory_space<vmem>>, %arg3: memref<128x128xbf16, #tpu.memory_space<vmem>>, %arg4: memref<1x128xf32, #tpu.memory_space<vmem>>, %arg5: memref<128x128xf32, #tpu.memory_space<vmem>>, %arg6: memref<1x1xf32, #tpu.memory_space<vmem>>, %arg7: memref<8x128xf32, #tpu.memory_space<vmem>>, %arg8: memref<8x128xf32, #tpu.memory_space<vmem>>, %arg9: memref<8x1xf32, #tpu.memory_space<vmem>>) attributes {dimension_semantics = [#tpu.dimension_semantics<parallel>, #tpu.dimension_semantics<arbitrary>], iteration_bounds = array<i64: 2, 1>, scalar_prefetch = 0 : i64, scratch_operands = 2 : i64, tpu.core_type = #tpu.core_type<tc>, window_params = [{transform_indices = @transform_0, window_bounds = array<i64: 8, 128>}, {pipeline_mode = #tpu.pipeline_mode<synchronous>, transform_indices = @transform_1, window_bounds = array<i64: 128, 128>}, {pipeline_mode = #tpu.pipeline_mode<synchronous>, transform_indices = @transform_2, window_bounds = array<i64: 1, 128>}, {pipeline_mode = #tpu.pipeline_mode<synchronous>, transform_indices = @transform_3, window_bounds = array<i64: 128, 128>}, {pipeline_mode = #tpu.pipeline_mode<synchronous>, transform_indices = @transform_4, window_bounds = array<i64: 1, 1>}, {transform_indices = @transform_5, window_bounds = array<i64: 8, 128>}]} {
    %c0 = arith.constant 0 : index
    %c0_0 = arith.constant 0 : index
    %0 = vector.load %arg2[%c0, %c0_0] : memref<8x128xf32, #tpu.memory_space<vmem>>, vector<8x128xf32>
    %1 = arith.mulf %0, %0 : vector<8x128xf32>
    %cst = arith.constant dense<0.000000e+00> : vector<8xf32>
    %2 = vector.multi_reduction <add>, %1, %cst [1] : vector<8x128xf32> to vector<8xf32>
    %3 = vector.shape_cast %2 : vector<8xf32> to vector<8x1xf32>
    %4 = arith.truncf %0 : vector<8x128xf32> to vector<8x128xbf16>
    %c0_1 = arith.constant 0 : index
    %c0_2 = arith.constant 0 : index
    %5 = vector.load %arg3[%c0_1, %c0_2] : memref<128x128xbf16, #tpu.memory_space<vmem>>, vector<128x128xbf16>
    %cst_3 = arith.constant dense<0.000000e+00> : vector<8x128xf32>
    %6 = tpu.matmul %4, %5, %cst_3 {dimension_numbers = #tpu.dot_dimension_numbers<[1], [0], [0], [1], [0, 0, 1, 1], [], []>} : vector<8x128xbf16>, vector<128x128xbf16>, vector<8x128xf32> -> vector<8x128xf32>
    %c0_4 = arith.constant 0 : index
    %c0_5 = arith.constant 0 : index
    %7 = vector.load %arg4[%c0_4, %c0_5] : memref<1x128xf32, #tpu.memory_space<vmem>>, vector<1x128xf32>
    %c0_6 = arith.constant 0 : index
    %c0_7 = arith.constant 0 : index
    %8 = vector.load %arg6[%c0_6, %c0_7] : memref<1x1xf32, #tpu.memory_space<vmem>>, vector<1x1xf32>
    %9 = math.sqrt %3 : vector<8x1xf32>
    %cst_8 = arith.constant 1.000000e-15 : f32
    %10 = vector.broadcast %cst_8 : f32 to vector<8x1xf32>
    %11 = arith.maximumf %9, %10 : vector<8x1xf32>
    %12 = arith.mulf %6, %6 : vector<8x128xf32>
    %cst_9 = arith.constant dense<0.000000e+00> : vector<8xf32>
    %13 = vector.multi_reduction <add>, %12, %cst_9 [1] : vector<8x128xf32> to vector<8xf32>
    %14 = vector.shape_cast %13 : vector<8xf32> to vector<8x1xf32>
    %15 = math.sqrt %14 : vector<8x1xf32>
    %cst_10 = arith.constant 1.000000e-15 : f32
    %16 = vector.broadcast %cst_10 : f32 to vector<8x1xf32>
    %17 = arith.maximumf %15, %16 : vector<8x1xf32>
    %18 = math.absf %6 : vector<8x128xf32>
    %cst_11 = arith.constant dense<0xFF800000> : vector<8xf32>
    %19 = vector.multi_reduction <maximumf>, %18, %cst_11 [1] : vector<8x128xf32> to vector<8xf32>
    %20 = vector.shape_cast %19 : vector<8xf32> to vector<8x1xf32>
    %cst_12 = arith.constant 0.000000e+00 : f32
    %21 = vector.broadcast %cst_12 : f32 to vector<8x1xf32>
    %22 = arith.cmpf oeq, %20, %21 : vector<8x1xf32>
    %23 = tpu.reciprocal %11 {approx = true} : vector<8x1xf32> -> vector<8x1xf32>
    %24 = arith.mulf %17, %23 : vector<8x1xf32>
    %cst_13 = arith.constant 1.000000e+00 : f32
    %25 = vector.broadcast %cst_13 : f32 to vector<8x1xf32>
    %26 = arith.mulf %25, %11 : vector<8x1xf32>
    %cst_14 = arith.constant -0.999989986 : f32
    %cst_15 = arith.constant 0.999989986 : f32
    %27 = vector.broadcast %cst_14 : f32 to vector<8x1xf32>
    %28 = arith.maximumf %27, %26 : vector<8x1xf32>
    %29 = vector.broadcast %cst_15 : f32 to vector<8x1xf32>
    %30 = arith.minimumf %29, %28 : vector<8x1xf32>
    %31 = math.log1p %30 : vector<8x1xf32>
    %cst_16 = arith.constant 0.000000e+00 : f32
    %32 = vector.broadcast %cst_16 : f32 to vector<8x1xf32>
    %33 = arith.subf %32, %30 : vector<8x1xf32>
    %34 = math.log1p %33 : vector<8x1xf32>
    %35 = arith.subf %31, %34 : vector<8x1xf32>
    %cst_17 = arith.constant 5.000000e-01 : f32
    %36 = vector.broadcast %cst_17 : f32 to vector<8x1xf32>
    %37 = arith.mulf %36, %35 : vector<8x1xf32>
    %38 = arith.mulf %24, %37 : vector<8x1xf32>
    %39 = math.tanh %38 : vector<8x1xf32>
    %cst_18 = arith.constant 1.000000e+00 : f32
    %40 = vector.broadcast %cst_18 : f32 to vector<8x1xf32>
    %41 = arith.mulf %17, %40 : vector<8x1xf32>
    %42 = arith.divf %39, %41 : vector<8x1xf32>
    %cst_19 = arith.constant 0.000000e+00 : f32
    %43 = vector.broadcast %cst_19 : f32 to vector<8x1xf32>
    %44 = arith.select %22, %43, %42 : vector<8x1xi1>, vector<8x1xf32>
    %45 = arith.mulf %39, %39 : vector<8x1xf32>
    %cst_20 = arith.constant 1.000000e+00 : f32
    %46 = vector.broadcast %cst_20 : f32 to vector<8x1xf32>
    %47 = arith.mulf %45, %46 : vector<8x1xf32>
    %cst_21 = arith.constant 0.000000e+00 : f32
    %48 = vector.broadcast %cst_21 : f32 to vector<8x1xf32>
    %49 = arith.select %22, %48, %47 : vector<8x1xi1>, vector<8x1xf32>
    %c0_22 = arith.constant 0 : index
    %c0_23 = arith.constant 0 : index
    %50 = vector.load %arg5[%c0_22, %c0_23] : memref<128x128xf32, #tpu.memory_space<vmem>>, vector<128x128xf32>
    %cst_24 = arith.constant dense<0.000000e+00> : vector<8x128xf32>
    %51 = tpu.matmul %6, %50, %cst_24 {dimension_numbers = #tpu.dot_dimension_numbers<[1], [0], [0], [1], [0, 0, 1, 1], [], []>} : vector<8x128xf32>, vector<128x128xf32>, vector<8x128xf32> -> vector<8x128xf32>
    %52 = vector.extract_strided_slice %51 {offsets = [0, 0], sizes = [8, 1], strides = [1, 1]} : vector<8x128xf32> to vector<8x1xf32>
    %53 = arith.mulf %44, %52 : vector<8x1xf32>
    %cst_25 = arith.constant 2.000000e+00 : f32
    %54 = vector.broadcast %cst_25 : f32 to vector<8x1xf32>
    %55 = arith.mulf %54, %53 : vector<8x1xf32>
    %cst_26 = arith.constant 1.000000e+00 : f32
    %56 = vector.broadcast %cst_26 : f32 to vector<8x1xf32>
    %57 = arith.addf %56, %55 : vector<8x1xf32>
    %cst_27 = arith.constant 1.000000e+00 : f32
    %58 = vector.broadcast %cst_27 : f32 to vector<1x1xf32>
    %59 = arith.mulf %58, %8 : vector<1x1xf32>
    %60 = vector.broadcast %59 : vector<1x1xf32> to vector<8x1xf32>
    %61 = arith.addf %57, %60 : vector<8x1xf32>
    %cst_28 = arith.constant 1.000000e+00 : f32
    %62 = vector.broadcast %cst_28 : f32 to vector<8x1xf32>
    %63 = arith.mulf %62, %49 : vector<8x1xf32>
    %cst_29 = arith.constant 1.000000e+00 : f32
    %64 = vector.broadcast %cst_29 : f32 to vector<8x1xf32>
    %65 = arith.subf %64, %63 : vector<8x1xf32>
    %cst_30 = arith.constant 1.000000e+00 : f32
    %66 = vector.broadcast %cst_30 : f32 to vector<8x1xf32>
    %67 = arith.addf %66, %55 : vector<8x1xf32>
    %cst_31 = arith.constant 1.000000e+00 : f32
    %68 = vector.broadcast %cst_31 : f32 to vector<8x1xf32>
    %69 = arith.mulf %68, %49 : vector<8x1xf32>
    %70 = vector.broadcast %8 : vector<1x1xf32> to vector<8x1xf32>
    %71 = arith.mulf %69, %70 : vector<8x1xf32>
    %72 = arith.addf %67, %71 : vector<8x1xf32>
    %cst_32 = arith.constant 1.000000e-15 : f32
    %73 = vector.broadcast %cst_32 : f32 to vector<8x1xf32>
    %74 = arith.maximumf %72, %73 : vector<8x1xf32>
    %75 = tpu.reciprocal %74 {approx = true} : vector<8x1xf32> -> vector<8x1xf32>
    %76 = arith.mulf %61, %44 : vector<8x1xf32>
    %77 = arith.mulf %76, %75 : vector<8x1xf32>
    %78 = arith.mulf %65, %75 : vector<8x1xf32>
    %79 = arith.mulf %77, %77 : vector<8x1xf32>
    %80 = arith.mulf %79, %14 : vector<8x1xf32>
    %cst_33 = arith.constant 2.000000e+00 : f32
    %81 = vector.broadcast %cst_33 : f32 to vector<8x1xf32>
    %82 = arith.mulf %81, %77 : vector<8x1xf32>
    %83 = arith.mulf %82, %78 : vector<8x1xf32>
    %84 = arith.mulf %83, %52 : vector<8x1xf32>
    %85 = arith.addf %80, %84 : vector<8x1xf32>
    %86 = arith.mulf %78, %78 : vector<8x1xf32>
    %87 = vector.broadcast %8 : vector<1x1xf32> to vector<8x1xf32>
    %88 = arith.mulf %86, %87 : vector<8x1xf32>
    %89 = arith.addf %85, %88 : vector<8x1xf32>
    %cst_34 = arith.constant 0.000000e+00 : f32
    %90 = vector.broadcast %cst_34 : f32 to vector<8x1xf32>
    %91 = arith.maximumf %89, %90 : vector<8x1xf32>
    %92 = math.sqrt %91 : vector<8x1xf32>
    %cst_35 = arith.constant 1.000000e-15 : f32
    %93 = vector.broadcast %cst_35 : f32 to vector<8x1xf32>
    %94 = arith.maximumf %92, %93 : vector<8x1xf32>
    %cst_36 = arith.constant 0.995999991 : f32
    %95 = vector.broadcast %cst_36 : f32 to vector<8x1xf32>
    %96 = arith.cmpf ogt, %94, %95 : vector<8x1xf32>
    %cst_37 = arith.constant 0.995999991 : f32
    %97 = vector.broadcast %cst_37 : f32 to vector<8x1xf32>
    %98 = arith.divf %97, %94 : vector<8x1xf32>
    %cst_38 = arith.constant 1.000000e+00 : f32
    %99 = vector.broadcast %cst_38 : f32 to vector<8x1xf32>
    %100 = arith.select %96, %98, %99 : vector<8x1xi1>, vector<8x1xf32>
    %101 = arith.mulf %100, %77 : vector<8x1xf32>
    %102 = arith.mulf %100, %78 : vector<8x1xf32>
    %103 = vector.broadcast %101 : vector<8x1xf32> to vector<8x128xf32>
    %104 = arith.mulf %103, %6 : vector<8x128xf32>
    %105 = vector.broadcast %102 : vector<8x1xf32> to vector<8x128xf32>
    %106 = vector.broadcast %7 : vector<1x128xf32> to vector<8x128xf32>
    %107 = arith.mulf %105, %106 : vector<8x128xf32>
    %108 = arith.addf %104, %107 : vector<8x128xf32>
    %c0_39 = arith.constant 0 : index
    %c0_40 = arith.constant 0 : index
    %109 = vector.load %arg7[%c0_39, %c0_40] : memref<8x128xf32, #tpu.memory_space<vmem>>, vector<8x128xf32>
    tpu.vector_store %arg7[%c0_39, %c0_40], %108 {strides = array<i32>} : memref<8x128xf32, #tpu.memory_space<vmem>>, vector<8x128xf32>,
    return
  }
  func.func @transform_0(%arg0: i32, %arg1: i32) -> (i32, i32) {
    %c0_i32 = arith.constant 0 : i32
    return %arg0, %arg1 : i32, i32
  }
  func.func @transform_1(%arg0: i32, %arg1: i32) -> (i32, i32) {
    %c0_i32 = arith.constant 0 : i32
    %c0_i32_0 = arith.constant 0 : i32
    return %arg1, %c0_i32 : i32, i32
  }
  func.func @transform_2(%arg0: i32, %arg1: i32) -> (i32, i32) {
    %c0_i32 = arith.constant 0 : i32
    %c0_i32_0 = arith.constant 0 : i32
    %c0_i32_1 = arith.constant 0 : i32
    return %c0_i32, %c0_i32_0 : i32, i32
  }
  func.func @transform_3(%arg0: i32, %arg1: i32) -> (i32, i32) {
    %c0_i32 = arith.constant 0 : i32
    %c0_i32_0 = arith.constant 0 : i32
    %c0_i32_1 = arith.constant 0 : i32
    return %c0_i32, %c0_i32_0 : i32, i32
  }
  func.func @transform_4(%arg0: i32, %arg1: i32) -> (i32, i32) {
    %c0_i32 = arith.constant 0 : i32
    %c0_i32_0 = arith.constant 0 : i32
    %c0_i32_1 = arith.constant 0 : i32
    return %c0_i32, %c0_i32_0 : i32, i32
  }
  func.func @transform_5(%arg0: i32, %arg1: i32) -> (i32, i32) {
    %c0_i32 = arith.constant 0 : i32
    %c0_i32_0 = arith.constant 0 : i32
    return %arg0, %c0_i32 : i32, i32
  }
}

module attributes {stable_mosaic.version = 11 : i64} {
  func.func @hyp_linear_kernel(%arg0: i32, %arg1: i32, %arg2: memref<8x128xf32, #tpu.memory_space<vmem>>, %arg3: memref<128x128xbf16, #tpu.memory_space<vmem>>, %arg4: memref<1x128xf32, #tpu.memory_space<vmem>>, %arg5: memref<128x128xf32, #tpu.memory_space<vmem>>, %arg6: memref<1x1xf32, #tpu.memory_space<vmem>>, %arg7: memref<8x128xf32, #tpu.memory_space<vmem>>, %arg8: memref<8x128xf32, #tpu.memory_space<vmem>>, %arg9: memref<8x1xf32, #tpu.memory_space<vmem>>) attributes {dimension_semantics = [#tpu.dimension_semantics<parallel>, #tpu.dimension_semantics<arbitrary>], iteration_bounds = array<i64: 2, 1>, scalar_prefetch = 0 : i64, scratch_operands = 2 : i64, tpu.core_type = #tpu.core_type<tc>, window_params = [{transform_indices = @transform_0, window_bounds = array<i64: 8, 128>}, {transform_indices = @transform_1, window_bounds = array<i64: 128, 128>}, {pipeline_mode = #tpu.pipeline_mode<synchronous>, transform_indices = @transform_2, window_bounds = array<i64: 1, 128>}, {pipeline_mode = #tpu.pipeline_mode<synchronous>, transform_indices = @transform_3, window_bounds = array<i64: 128, 128>}, {pipeline_mode = #tpu.pipeline_mode<synchronous>, transform_indices = @transform_4, window_bounds = array<i64: 1, 1>}, {transform_indices = @transform_5, window_bounds = array<i64: 8, 128>}]} {
    %c0 = arith.constant 0 : index
    %c0_0 = arith.constant 0 : index
    %0 = vector.load %arg2[%c0, %c0_0] : memref<8x128xf32, #tpu.memory_space<vmem>>, vector<8x128xf32>
    %1 = arith.mulf %0, %0 : vector<8x128xf32>
    %cst = arith.constant dense<0.000000e+00> : vector<8xf32>
    %2 = vector.multi_reduction <add>, %1, %cst [1] : vector<8x128xf32> to vector<8xf32>
    %3 = vector.shape_cast %2 : vector<8xf32> to vector<8x1xf32>
    %4 = arith.truncf %0 : vector<8x128xf32> to vector<8x128xbf16>
    %c0_1 = arith.constant 0 : index
    %c0_2 = arith.constant 0 : index
    %5 = vector.load %arg3[%c0_1, %c0_2] : memref<128x128xbf16, #tpu.memory_space<vmem>>, vector<128x128xbf16>
    %cst_3 = arith.constant dense<0.000000e+00> : vector<8x128xf32>
    %6 = tpu.matmul %4, %5, %cst_3 {dimension_numbers = #tpu.dot_dimension_numbers<[1], [0], [0], [1], [0, 0, 1, 1], [], []>} : vector<8x128xbf16>, vector<128x128xbf16>, vector<8x128xf32> -> vector<8x128xf32>
    %c0_4 = arith.constant 0 : index
    %c0_5 = arith.constant 0 : index
    %7 = vector.load %arg4[%c0_4, %c0_5] : memref<1x128xf32, #tpu.memory_space<vmem>>, vector<1x128xf32>
    %c0_6 = arith.constant 0 : index
    %c0_7 = arith.constant 0 : index
    %8 = vector.load %arg6[%c0_6, %c0_7] : memref<1x1xf32, #tpu.memory_space<vmem>>, vector<1x1xf32>
    %9 = math.sqrt %3 : vector<8x1xf32>
    %cst_8 = arith.constant 1.000000e-15 : f32
    %10 = vector.broadcast %cst_8 : f32 to vector<8x1xf32>
    %11 = arith.maximumf %9, %10 : vector<8x1xf32>
    %12 = arith.mulf %6, %6 : vector<8x128xf32>
    %cst_9 = arith.constant dense<0.000000e+00> : vector<8xf32>
    %13 = vector.multi_reduction <add>, %12, %cst_9 [1] : vector<8x128xf32> to vector<8xf32>
    %14 = vector.shape_cast %13 : vector<8xf32> to vector<8x1xf32>
    %15 = math.sqrt %14 : vector<8x1xf32>
    %cst_10 = arith.constant 1.000000e-15 : f32
    %16 = vector.broadcast %cst_10 : f32 to vector<8x1xf32>
    %17 = arith.maximumf %15, %16 : vector<8x1xf32>
    %18 = math.absf %6 : vector<8x128xf32>
    %cst_11 = arith.constant dense<0xFF800000> : vector<8xf32>
    %19 = vector.multi_reduction <maximumf>, %18, %cst_11 [1] : vector<8x128xf32> to vector<8xf32>
    %20 = vector.shape_cast %19 : vector<8xf32> to vector<8x1xf32>
    %cst_12 = arith.constant 0.000000e+00 : f32
    %21 = vector.broadcast %cst_12 : f32 to vector<8x1xf32>
    %22 = arith.cmpf oeq, %20, %21 : vector<8x1xf32>
    %23 = tpu.reciprocal %11 {approx = true} : vector<8x1xf32> -> vector<8x1xf32>
    %24 = arith.mulf %17, %23 : vector<8x1xf32>
    %cst_13 = arith.constant 1.000000e+00 : f32
    %25 = vector.broadcast %cst_13 : f32 to vector<8x1xf32>
    %26 = arith.mulf %25, %11 : vector<8x1xf32>
    %cst_14 = arith.constant -0.999989986 : f32
    %cst_15 = arith.constant 0.999989986 : f32
    %27 = vector.broadcast %cst_14 : f32 to vector<8x1xf32>
    %28 = arith.maximumf %27, %26 : vector<8x1xf32>
    %29 = vector.broadcast %cst_15 : f32 to vector<8x1xf32>
    %30 = arith.minimumf %29, %28 : vector<8x1xf32>
    %31 = math.log1p %30 : vector<8x1xf32>
    %cst_16 = arith.constant 0.000000e+00 : f32
    %32 = vector.broadcast %cst_16 : f32 to vector<8x1xf32>
    %33 = arith.subf %32, %30 : vector<8x1xf32>
    %34 = math.log1p %33 : vector<8x1xf32>
    %35 = arith.subf %31, %34 : vector<8x1xf32>
    %cst_17 = arith.constant 5.000000e-01 : f32
    %36 = vector.broadcast %cst_17 : f32 to vector<8x1xf32>
    %37 = arith.mulf %36, %35 : vector<8x1xf32>
    %38 = arith.mulf %24, %37 : vector<8x1xf32>
    %39 = math.tanh %38 : vector<8x1xf32>
    %cst_18 = arith.constant 1.000000e+00 : f32
    %40 = vector.broadcast %cst_18 : f32 to vector<8x1xf32>
    %41 = arith.mulf %17, %40 : vector<8x1xf32>
    %42 = arith.divf %39, %41 : vector<8x1xf32>
    %cst_19 = arith.constant 0.000000e+00 : f32
    %43 = vector.broadcast %cst_19 : f32 to vector<8x1xf32>
    %44 = arith.select %22, %43, %42 : vector<8x1xi1>, vector<8x1xf32>
    %45 = arith.mulf %39, %39 : vector<8x1xf32>
    %cst_20 = arith.constant 1.000000e+00 : f32
    %46 = vector.broadcast %cst_20 : f32 to vector<8x1xf32>
    %47 = arith.mulf %45, %46 : vector<8x1xf32>
    %cst_21 = arith.constant 0.000000e+00 : f32
    %48 = vector.broadcast %cst_21 : f32 to vector<8x1xf32>
    %49 = arith.select %22, %48, %47 : vector<8x1xi1>, vector<8x1xf32>
    %c0_22 = arith.constant 0 : index
    %c0_23 = arith.constant 0 : index
    %50 = vector.load %arg5[%c0_22, %c0_23] : memref<128x128xf32, #tpu.memory_space<vmem>>, vector<128x128xf32>
    %cst_24 = arith.constant dense<0.000000e+00> : vector<8x128xf32>
    %51 = tpu.matmul %6, %50, %cst_24 {dimension_numbers = #tpu.dot_dimension_numbers<[1], [0], [0], [1], [0, 0, 1, 1], [], []>} : vector<8x128xf32>, vector<128x128xf32>, vector<8x128xf32> -> vector<8x128xf32>
    %52 = vector.extract_strided_slice %51 {offsets = [0, 0], sizes = [8, 1], strides = [1, 1]} : vector<8x128xf32> to vector<8x1xf32>
    %53 = arith.mulf %44, %52 : vector<8x1xf32>
    %cst_25 = arith.constant 2.000000e+00 : f32
    %54 = vector.broadcast %cst_25 : f32 to vector<8x1xf32>
    %55 = arith.mulf %54, %53 : vector<8x1xf32>
    %cst_26 = arith.constant 1.000000e+00 : f32
    %56 = vector.broadcast %cst_26 : f32 to vector<8x1xf32>
    %57 = arith.addf %56, %55 : vector<8x1xf32>
    %cst_27 = arith.constant 1.000000e+00 : f32
    %58 = vector.broadcast %cst_27 : f32 to vector<1x1xf32>
    %59 = arith.mulf %58, %8 : vector<1x1xf32>
    %60 = vector.broadcast %59 : vector<1x1xf32> to vector<8x1xf32>
    %61 = arith.addf %57, %60 : vector<8x1xf32>
    %cst_28 = arith.constant 1.000000e+00 : f32
    %62 = vector.broadcast %cst_28 : f32 to vector<8x1xf32>
    %63 = arith.mulf %62, %49 : vector<8x1xf32>
    %cst_29 = arith.constant 1.000000e+00 : f32
    %64 = vector.broadcast %cst_29 : f32 to vector<8x1xf32>
    %65 = arith.subf %64, %63 : vector<8x1xf32>
    %cst_30 = arith.constant 1.000000e+00 : f32
    %66 = vector.broadcast %cst_30 : f32 to vector<8x1xf32>
    %67 = arith.addf %66, %55 : vector<8x1xf32>
    %cst_31 = arith.constant 1.000000e+00 : f32
    %68 = vector.broadcast %cst_31 : f32 to vector<8x1xf32>
    %69 = arith.mulf %68, %49 : vector<8x1xf32>
    %70 = vector.broadcast %8 : vector<1x1xf32> to vector<8x1xf32>
    %71 = arith.mulf %69, %70 : vector<8x1xf32>
    %72 = arith.addf %67, %71 : vector<8x1xf32>
    %cst_32 = arith.constant 1.000000e-15 : f32
    %73 = vector.broadcast %cst_32 : f32 to vector<8x1xf32>
    %74 = arith.maximumf %72, %73 : vector<8x1xf32>
    %75 = tpu.reciprocal %74 {approx = true} : vector<8x1xf32> -> vector<8x1xf32>
    %76 = arith.mulf %61, %44 : vector<8x1xf32>
    %77 = arith.mulf %76, %75 : vector<8x1xf32>
    %78 = arith.mulf %65, %75 : vector<8x1xf32>
    %79 = arith.mulf %77, %77 : vector<8x1xf32>
    %80 = arith.mulf %79, %14 : vector<8x1xf32>
    %cst_33 = arith.constant 2.000000e+00 : f32
    %81 = vector.broadcast %cst_33 : f32 to vector<8x1xf32>
    %82 = arith.mulf %81, %77 : vector<8x1xf32>
    %83 = arith.mulf %82, %78 : vector<8x1xf32>
    %84 = arith.mulf %83, %52 : vector<8x1xf32>
    %85 = arith.addf %80, %84 : vector<8x1xf32>
    %86 = arith.mulf %78, %78 : vector<8x1xf32>
    %87 = vector.broadcast %8 : vector<1x1xf32> to vector<8x1xf32>
    %88 = arith.mulf %86, %87 : vector<8x1xf32>
    %89 = arith.addf %85, %88 : vector<8x1xf32>
    %cst_34 = arith.constant 0.000000e+00 : f32
    %90 = vector.broadcast %cst_34 : f32 to vector<8x1xf32>
    %91 = arith.maximumf %89, %90 : vector<8x1xf32>
    %92 = math.sqrt %91 : vector<8x1xf32>
    %cst_35 = arith.constant 1.000000e-15 : f32
    %93 = vector.broadcast %cst_35 : f32 to vector<8x1xf32>
    %94 = arith.maximumf %92, %93 : vector<8x1xf32>
    %cst_36 = arith.constant 0.995999991 : f32
    %95 = vector.broadcast %cst_36 : f32 to vector<8x1xf32>
    %96 = arith.cmpf ogt, %94, %95 : vector<8x1xf32>
    %cst_37 = arith.constant 0.995999991 : f32
    %97 = vector.broadcast %cst_37 : f32 to vector<8x1xf32>
    %98 = arith.divf %97, %94 : vector<8x1xf32>
    %cst_38 = arith.constant 1.000000e+00 : f32
    %99 = vector.broadcast %cst_38 : f32 to vector<8x1xf32>
    %100 = arith.select %96, %98, %99 : vector<8x1xi1>, vector<8x1xf32>
    %101 = arith.mulf %100, %77 : vector<8x1xf32>
    %102 = arith.mulf %100, %78 : vector<8x1xf32>
    %103 = vector.broadcast %101 : vector<8x1xf32> to vector<8x128xf32>
    %104 = arith.mulf %103, %6 : vector<8x128xf32>
    %105 = vector.broadcast %102 : vector<8x1xf32> to vector<8x128xf32>
    %106 = vector.broadcast %7 : vector<1x128xf32> to vector<8x128xf32>
    %107 = arith.mulf %105, %106 : vector<8x128xf32>
    %108 = arith.addf %104, %107 : vector<8x128xf32>
    %c0_39 = arith.constant 0 : index
    %c0_40 = arith.constant 0 : index
    %109 = vector.load %arg7[%c0_39, %c0_40] : memref<8x128xf32, #tpu.memory_space<vmem>>, vector<8x128xf32>
    tpu.vector_store %arg7[%c0_39, %c0_40], %108 {strides = array<i32>} : memref<8x128xf32, #tpu.memory_space<vmem>>, vector<8x128xf32>,
    return
  }
  func.func @transform_0(%arg0: i32, %arg1: i32) -> (i32, i32) {
    %c0_i32 = arith.constant 0 : i32
    return %arg0, %arg1 : i32, i32
  }
  func.func @transform_1(%arg0: i32, %arg1: i32) -> (i32, i32) {
    %c0_i32 = arith.constant 0 : i32
    %c0_i32_0 = arith.constant 0 : i32
    return %arg1, %c0_i32 : i32, i32
  }
  func.func @transform_2(%arg0: i32, %arg1: i32) -> (i32, i32) {
    %c0_i32 = arith.constant 0 : i32
    %c0_i32_0 = arith.constant 0 : i32
    %c0_i32_1 = arith.constant 0 : i32
    return %c0_i32, %c0_i32_0 : i32, i32
  }
  func.func @transform_3(%arg0: i32, %arg1: i32) -> (i32, i32) {
    %c0_i32 = arith.constant 0 : i32
    %c0_i32_0 = arith.constant 0 : i32
    %c0_i32_1 = arith.constant 0 : i32
    return %c0_i32, %c0_i32_0 : i32, i32
  }
  func.func @transform_4(%arg0: i32, %arg1: i32) -> (i32, i32) {
    %c0_i32 = arith.constant 0 : i32
    %c0_i32_0 = arith.constant 0 : i32
    %c0_i32_1 = arith.constant 0 : i32
    return %c0_i32, %c0_i32_0 : i32, i32
  }
  func.func @transform_5(%arg0: i32, %arg1: i32) -> (i32, i32) {
    %c0_i32 = arith.constant 0 : i32
    %c0_i32_0 = arith.constant 0 : i32
    return %arg0, %c0_i32 : i32, i32
  }
}

</mosaic_0001>

<llo_original>
// kernel: tpu_custom_call.1
$region0: #{tpu_custom_call.1}
  #allocation0 [shape = 'u32[]', space=smem, size = 0x4, offset = 0x4, fixed_abs, tag = 'smem constant byte address 0x4 - core index']
  #allocation1 [shape = 'u32[144,128]{1,0:T(1,128)}', space=vmem, size = 0x12000, scoped, tag = 'internal scratch']
  #allocation2 [shape = 'f32[8,128]{1,0:T(8,128)}', space=vmem, size = 0x1000, scoped, tag = 'scratch operand']
  #allocation3 [shape = 'f32[8,1]{1,0:T(8,128)}', space=vmem, size = 0x1000, scoped, tag = 'scratch operand']
  #allocation4 [shape = 'f32[1,1]{1,0:T(1,128)S(1)}', space=vmem, size = 0x200, scoped, tag = 'scoped memory for tpu_custom_call.1']
  %s0 = inlined_call_operand.hbm [shape: f32[16,128], index: 0, kind: input, shape index: {}]
  %s1 = inlined_call_operand.hbm [shape: bf16[128,128], index: 1, kind: input, shape index: {}]
  %s2 = inlined_call_operand.vmem [shape: f32[1,128], index: 2, kind: input, shape index: {}]
  %s3 = inlined_call_operand.hbm [shape: f32[128,128], index: 3, kind: input, shape index: {}]
  %s4 = inlined_call_operand.<no memory space> [shape: f32[1,1], index: 4, kind: input, shape index: {}]
  %s5 = inlined_call_operand.hbm [shape: f32[16,128], index: 5, kind: output, shape index: {}]
  %s6 = sld [smem:[#allocation0]]
  $region65: #{tpu_custom_call.1} parent=0
    _
  %s8 = ssub.s32 1, %s6
  %s9 = scalar_select 0, %s8, %s6
  %v10 = vstv %s4
  %11 = vst [vmem:[#allocation4] sm:$0x1] %v10
  $region1: #{tpu_custom_call.1} parent=0
    #allocation5 [shape = 'u8[8192]{0}', space=vmem, size = 0x2000, scoped, tag = 'input window, operand 0']
    #allocation6 [shape = 's32[2]{0}', space=sflag, size = 0x8, scoped, tag = 'scoped memory for tpu_custom_call.1']
    #allocation7 [shape = 's32[2]{0}', space=sflag, size = 0x8, scoped, tag = 'scoped memory for tpu_custom_call.1']
    #allocation8 [shape = 'u8[32768]{0}', space=vmem, size = 0x8000, scoped, tag = 'input window, operand 1, single buffered']
    #allocation9 [shape = 's32[1]{0}', space=sflag, size = 0x4, scoped, tag = 'scoped memory for tpu_custom_call.1']
    #allocation10 [shape = 'u8[65536]{0}', space=vmem, size = 0x10000, scoped, tag = 'input window, operand 3, single buffered']
    #allocation11 [shape = 'u8[8192]{0}', space=vmem, size = 0x2000, scoped, tag = 'output window, operand 0']
    %12 = vsyncpa [#allocation6], 0
    %s13 = scalar_lea.sflag [#allocation6], 1
    %14 = vsyncpa %s13, 0
    %15 = vsyncpa [#allocation9], 0
    %16 = vsyncpa [#allocation7], 0
    %s17 = scalar_lea.sflag [#allocation7], 1
    %18 = vsyncpa %s17, 0
    loop: start=0, step=1, limit=4
    $region2: #{tpu_custom_call.1} parent=1 // loop_pre_header
      _
    $region3: #{tpu_custom_call.1} parent=1 // loop_header
      %s20 = sphi 0, %s24
      %p21 = scmp.ge.s32.totalorder %s20, 4
      %s27 = sphi 0, %s39
      %s28 = sphi 0, %s35
      %s29 = sphi 0, %s27
      %s30 = sphi 0, %s28
      %s31 = sphi 0, %s29
      %s32 = sphi 0, %s30
      %s44 = sphi 0, %s46
      %s47 = sphi 0, %s44
      %s48 = sphi 0, %s47
      %s64 = sphi 0, %s48
      %s70 = sphi 0, %s72
      %s73 = sphi 0, %s70
      %s74 = sphi 0, %s73
      %s90 = sphi 0, %s74
      %s94 = sphi 0, %s94
      %s96 = sphi 0, %s94
      %s97 = sphi 0, %s96
      %s111 = sphi 0, %s97
      %s115 = sphi 0, %s115
      %s117 = sphi 0, %s115
      %s118 = sphi 0, %s117
      %s132 = sphi 0, %s118
      %s136 = sphi 0, %s136
      %s138 = sphi 0, %s136
      %s139 = sphi 0, %s138
      %s153 = sphi 0, %s139
      %s159 = sphi 0, %s161
      %s162 = sphi 0, %s159
      %s163 = sphi 0, %s162
      %s179 = sphi 0, %s163
    $region4: #{tpu_custom_call.1} parent=1 // loop_header_branch
      %23 = sbr.rel (%p21) target = $region8
    $region5: #{tpu_custom_call.1} parent=1 // loop_body
      %s25 = ssub.s32 %s20, 1
      %s26 = ssub.s32 %s20, 2
      %s33 = sadd.s32 1, %s28
      %p34 = scmp.ge.s32.totalorder %s33, 1
      %s35 = scalar_select %p34, 0, %s33
      %s36 = sadd.s32 1, %s27
      %s37 = scalar_select %p34, %s36, %s27
      %p38 = scmp.ge.s32.totalorder %s37, 2
      %s39 = scalar_select %p38, 0, %s37
      %s40 = ssub.s32 %s27, %s39
      %s41 = ssub.s32 %s28, %s35
      %s42 = sor.u32 %s40, %s41
      %p43 = scmp.eq.s32.totalorder %s42, 0
      %s45 = sadd.s32 %s44, 1
      %s46 = scalar_select %p43, %s44, %s45
      %p49 = pneg %p43
      %p50 = scmp.eq.s32.totalorder %s20, 1
      %p51 = por %p49, %p50
      %p52 = scmp.ne.s32.totalorder %s44, %s47
      %p53 = scmp.eq.s32.totalorder %s20, 0
      %p54 = por %p52, %p53
      %p55 = scmp.ne.s32.totalorder %s44, %s47
      %p56 = scmp.eq.s32.totalorder %s25, 1
      %p57 = por %p55, %p56
      %p58 = scmp.ne.s32.totalorder %s47, %s48
      %p59 = scmp.eq.s32.totalorder %s25, 0
      %p60 = por %p58, %p59
      %p61 = scmp.ne.s32.totalorder %s47, %s48
      %p62 = scmp.eq.s32.totalorder %s26, 1
      %p63 = por %p61, %p62
      %p65 = scmp.ne.s32.totalorder %s48, %s64
      %p66 = scmp.eq.s32.totalorder %s26, 0
      %p67 = por %p65, %p66
      %s68 = ssub.s32 %s28, %s35
      %p69 = scmp.eq.s32.totalorder %s68, 0
      %s71 = sadd.s32 %s70, 1
      %s72 = scalar_select %p69, %s70, %s71
      %p75 = pneg %p69
      %p76 = scmp.eq.s32.totalorder %s20, 1
      %p77 = por %p75, %p76
      %p78 = scmp.ne.s32.totalorder %s70, %s73
      %p79 = scmp.eq.s32.totalorder %s20, 0
      %p80 = por %p78, %p79
      %p81 = scmp.ne.s32.totalorder %s70, %s73
      %p82 = scmp.eq.s32.totalorder %s25, 1
      %p83 = por %p81, %p82
      %p84 = scmp.ne.s32.totalorder %s73, %s74
      %p85 = scmp.eq.s32.totalorder %s25, 0
      %p86 = por %p84, %p85
      %p87 = scmp.ne.s32.totalorder %s73, %s74
      %p88 = scmp.eq.s32.totalorder %s26, 1
      %p89 = por %p87, %p88
      %p91 = scmp.ne.s32.totalorder %s74, %s90
      %p92 = scmp.eq.s32.totalorder %s26, 0
      %p93 = por %p91, %p92
      %s95 = sadd.s32 %s94, 1
      %p98 = scmp.eq.s32.totalorder %s20, 1
      %p99 = scmp.ne.s32.totalorder %s94, %s96
      %p100 = scmp.eq.s32.totalorder %s20, 0
      %p101 = por %p99, %p100
      %p102 = scmp.ne.s32.totalorder %s94, %s96
      %p103 = scmp.eq.s32.totalorder %s25, 1
      %p104 = por %p102, %p103
      %p105 = scmp.ne.s32.totalorder %s96, %s97
      %p106 = scmp.eq.s32.totalorder %s25, 0
      %p107 = por %p105, %p106
      %p108 = scmp.ne.s32.totalorder %s96, %s97
      %p109 = scmp.eq.s32.totalorder %s26, 1
      %p110 = por %p108, %p109
      %p112 = scmp.ne.s32.totalorder %s97, %s111
      %p113 = scmp.eq.s32.totalorder %s26, 0
      %p114 = por %p112, %p113
      %s116 = sadd.s32 %s115, 1
      %p119 = scmp.eq.s32.totalorder %s20, 1
      %p120 = scmp.ne.s32.totalorder %s115, %s117
      %p121 = scmp.eq.s32.totalorder %s20, 0
      %p122 = por %p120, %p121
      %p123 = scmp.ne.s32.totalorder %s115, %s117
      %p124 = scmp.eq.s32.totalorder %s25, 1
      %p125 = por %p123, %p124
      %p126 = scmp.ne.s32.totalorder %s117, %s118
      %p127 = scmp.eq.s32.totalorder %s25, 0
      %p128 = por %p126, %p127
      %p129 = scmp.ne.s32.totalorder %s117, %s118
      %p130 = scmp.eq.s32.totalorder %s26, 1
      %p131 = por %p129, %p130
      %p133 = scmp.ne.s32.totalorder %s118, %s132
      %p134 = scmp.eq.s32.totalorder %s26, 0
      %p135 = por %p133, %p134
      %s137 = sadd.s32 %s136, 1
      %p140 = scmp.eq.s32.totalorder %s20, 1
      %p141 = scmp.ne.s32.totalorder %s136, %s138
      %p142 = scmp.eq.s32.totalorder %s20, 0
      %p143 = por %p141, %p142
      %p144 = scmp.ne.s32.totalorder %s136, %s138
      %p145 = scmp.eq.s32.totalorder %s25, 1
      %p146 = por %p144, %p145
      %p147 = scmp.ne.s32.totalorder %s138, %s139
      %p148 = scmp.eq.s32.totalorder %s25, 0
      %p149 = por %p147, %p148
      %p150 = scmp.ne.s32.totalorder %s138, %s139
      %p151 = scmp.eq.s32.totalorder %s26, 1
      %p152 = por %p150, %p151
      %p154 = scmp.ne.s32.totalorder %s139, %s153
      %p155 = scmp.eq.s32.totalorder %s26, 0
      %p156 = por %p154, %p155
      %s157 = ssub.s32 %s27, %s39
      %p158 = scmp.eq.s32.totalorder %s157, 0
      %s160 = sadd.s32 %s159, 1
      %s161 = scalar_select %p158, %s159, %s160
      %p164 = pneg %p158
      %p165 = scmp.eq.s32.totalorder %s20, 1
      %p166 = por %p164, %p165
      %p167 = scmp.ne.s32.totalorder %s159, %s162
      %p168 = scmp.eq.s32.totalorder %s20, 0
      %p169 = por %p167, %p168
      %p170 = scmp.ne.s32.totalorder %s159, %s162
      %p171 = scmp.eq.s32.totalorder %s25, 1
      %p172 = por %p170, %p171
      %p173 = scmp.ne.s32.totalorder %s162, %s163
      %p174 = scmp.eq.s32.totalorder %s25, 0
      %p175 = por %p173, %p174
      %p176 = scmp.ne.s32.totalorder %s162, %s163
      %p177 = scmp.eq.s32.totalorder %s26, 1
      %p178 = por %p176, %p177
      %p180 = scmp.ne.s32.totalorder %s163, %s179
      %p181 = scmp.eq.s32.totalorder %s26, 0
      %p182 = por %p180, %p181
      %p183 = scmp.le.s32.totalorder 1, %s20
      %p184 = scmp.lt.s32.totalorder %s20, 3
      %p185 = pnand %p183, %p184
      %p186 = pneg %p185
      // Predicated region
      $region9: #{tpu_custom_call.1} parent=5 // pred_check
        _
      $region10: #{tpu_custom_call.1} parent=5 // pred_check_branch
        %188 = sbr.rel (%p185) target = $region12
      $region11: #{tpu_custom_call.1} parent=5 // pred_region
        %s189 = ssub.s32 %s20, 1
        // Predicated region
        $region13: #{tpu_custom_call.1} parent=11 // pred_check
          %p190 = pneg %p86
        $region14: #{tpu_custom_call.1} parent=11 // pred_check_branch
          %192 = sbr.rel (%p190) target = $region16
        $region15: #{tpu_custom_call.1} parent=11 // pred_region
          %s193 = smul.u32 16, %s30
          %s195 = ssub.s32 1024, 1024
          %196 = vsyncadd [#allocation9], %s195
          %s197 = smul.addr %s193, 64
          %s198 = scalar_lea.hbm %s1, %s197
          %s199 = sshll.u32 [#allocation8], 4
          %s200 = int_to_ptr.vmem [resolvable:$true] %s199
          %205 = dma.hbm_to_vmem [thread:$0]  %s198, 1024, %s200, [#allocation9], 64, 64, 4
        $region16: #{tpu_custom_call.1} parent=11 // pred_fallthru
          _
        // Predicated region
        $region17: #{tpu_custom_call.1} parent=11 // pred_check
          %p206 = pneg %p107
        $region18: #{tpu_custom_call.1} parent=11 // pred_check_branch
          %208 = sbr.rel (%p206) target = $region20
        $region19: #{tpu_custom_call.1} parent=11 // pred_region
          _
        $region20: #{tpu_custom_call.1} parent=11 // pred_fallthru
          _
        // Predicated region
        $region21: #{tpu_custom_call.1} parent=11 // pred_check
          %p209 = pneg %p128
        $region22: #{tpu_custom_call.1} parent=11 // pred_check_branch
          %211 = sbr.rel (%p209) target = $region24
        $region23: #{tpu_custom_call.1} parent=11 // pred_region
          %s213 = ssub.s32 2048, 2048
          %214 = vsyncadd [#allocation9], %s213
          %s215 = sshll.u32 [#allocation10], 4
          %s216 = int_to_ptr.vmem [resolvable:$true] %s215
          %221 = dma.hbm_to_vmem [thread:$0]  %s3, 2048, %s216, [#allocation9], 128, 128, 8
        $region24: #{tpu_custom_call.1} parent=11 // pred_fallthru
          _
        // Predicated region
        $region25: #{tpu_custom_call.1} parent=11 // pred_check
          %p222 = pneg %p149
        $region26: #{tpu_custom_call.1} parent=11 // pred_check_branch
          %224 = sbr.rel (%p222) target = $region28
        $region27: #{tpu_custom_call.1} parent=11 // pred_region
          _
        $region28: #{tpu_custom_call.1} parent=11 // pred_fallthru
          _
      $region12: #{tpu_custom_call.1} parent=5 // pred_fallthru
        _
      %p225 = scmp.lt.s32.totalorder %s20, 2
      // Predicated region
      $region29: #{tpu_custom_call.1} parent=5 // pred_check
        %p226 = pneg %p225
      $region30: #{tpu_custom_call.1} parent=5 // pred_check_branch
        %228 = sbr.rel (%p226) target = $region32
      $region31: #{tpu_custom_call.1} parent=5 // pred_region
        // Predicated region
        $region33: #{tpu_custom_call.1} parent=31 // pred_check
          %p229 = pneg %p54
        $region34: #{tpu_custom_call.1} parent=31 // pred_check_branch
          %231 = sbr.rel (%p229) target = $region36
        $region35: #{tpu_custom_call.1} parent=31 // pred_region
          %s232 = sand.u32 %s44, 1
          %s233 = scalar_lea.sflag [#allocation6], %s232
          %s234 = sand.u32 %s44, 1
          %s235 = smul.addr %s234, 8
          %s236 = scalar_lea.vmem [#allocation5], %s235
          %s238 = ssub.s32 128, 128
          %239 = vsyncadd %s233, %s238
          %s240 = sadd.s32 %s28, %s27
          %s241 = smul.addr %s240, 128
          %s242 = scalar_lea.hbm %s0, %s241
          %s244 = sshll.u32 %s236, 4
          %s245 = int_to_ptr.vmem [resolvable:$true] %s244
          %247 = dma.hbm_to_vmem [thread:$0]  %s242, 128, %s245, %s233
        $region36: #{tpu_custom_call.1} parent=31 // pred_fallthru
          _
      $region32: #{tpu_custom_call.1} parent=5 // pred_fallthru
        _
      %p248 = scmp.le.s32.totalorder 1, %s20
      %p249 = scmp.lt.s32.totalorder %s20, 3
      %p250 = pnand %p248, %p249
      %p251 = pneg %p250
      // Predicated region
      $region37: #{tpu_custom_call.1} parent=5 // pred_check
        _
      $region38: #{tpu_custom_call.1} parent=5 // pred_check_branch
        %253 = sbr.rel (%p250) target = $region40
      $region39: #{tpu_custom_call.1} parent=5 // pred_region
        %s254 = ssub.s32 %s20, 1
        %s255 = sand.u32 %s47, 1
        %s256 = scalar_lea.sflag [#allocation6], %s255
        %s257 = sand.u32 %s47, 1
        %s258 = smul.addr %s257, 8
        %s259 = scalar_lea.vmem [#allocation5], %s258
        // Predicated region
        $region41: #{tpu_custom_call.1} parent=39 // pred_check
          %p260 = pneg %p60
        $region42: #{tpu_custom_call.1} parent=39 // pred_check_branch
          %262 = sbr.rel (%p260) target = $region44
        $region43: #{tpu_custom_call.1} parent=39 // pred_region
          %263 = dma.done %s256, 128
        $region44: #{tpu_custom_call.1} parent=39 // pred_fallthru
          _
        // Predicated region
        $region45: #{tpu_custom_call.1} parent=39 // pred_check
          %p264 = pneg %p86
        $region46: #{tpu_custom_call.1} parent=39 // pred_check_branch
          %266 = sbr.rel (%p264) target = $region48
        $region47: #{tpu_custom_call.1} parent=39 // pred_region
          %267 = dma.done [#allocation9], 1024
        $region48: #{tpu_custom_call.1} parent=39 // pred_fallthru
          _
        // Predicated region
        $region49: #{tpu_custom_call.1} parent=39 // pred_check
          %p268 = pneg %p128
        $region50: #{tpu_custom_call.1} parent=39 // pred_check_branch
          %270 = sbr.rel (%p268) target = $region52
        $region51: #{tpu_custom_call.1} parent=39 // pred_region
          %271 = dma.done [#allocation9], 2048
        $region52: #{tpu_custom_call.1} parent=39 // pred_fallthru
          _
        %s272 = sand.u32 %s47, 1
        %s273 = scalar_lea.sflag [#allocation6], %s272
        %s274 = sand.u32 %s47, 1
        %s275 = smul.addr %s274, 8
        %s276 = scalar_lea.vmem [#allocation5], %s275
        %p277 = pneg %p60
        %p278 = pneg %p57
        %p279 = pneg %p86
        %p280 = pneg %p83
        %p281 = pneg %p107
        %p282 = pneg %p104
        %p283 = pneg %p128
        %p284 = pneg %p125
        %p285 = pneg %p149
        %p286 = pneg %p146
        %p287 = pneg %p175
        %p288 = pneg %p172
        %s289 = sand.u32 %s162, 1
        %s290 = scalar_lea.sflag [#allocation7], %s289
        %s291 = sand.u32 %s162, 1
        %s292 = smul.addr %s291, 8
        %s293 = scalar_lea.vmem [#allocation11], %s292
        %s294 = smul.u32 16, %s30
        %v296 = vld [vmem:[%s259] sm:$0xff]
        %v297 = vmul.f32 %v296, %v296
        %298 = vadd.xlane.f32.xlu0 %v297
        %v299 = vpop.xlane.xlu0 %298
        %v300 = vpack.c.bf16 %v296, %v296
        %v301 = vld [vmem:[#allocation8] sm:$0xf]
        %v302 = vld [vmem:[#allocation8 + $0x4] sm:$0xf]
        %v303 = vld [vmem:[#allocation8 + $0x8] sm:$0xf]
        %v304 = vld [vmem:[#allocation8 + $0xc] sm:$0xf]
        %v305 = vld [vmem:[#allocation8 + $0x10] sm:$0xf]
        %v306 = vld [vmem:[#allocation8 + $0x14] sm:$0xf]
        %v307 = vld [vmem:[#allocation8 + $0x18] sm:$0xf]
        %v308 = vld [vmem:[#allocation8 + $0x1c] sm:$0xf]
        %v309 = vld [vmem:[#allocation8 + $0x20] sm:$0xf]
        %v310 = vld [vmem:[#allocation8 + $0x24] sm:$0xf]
        %v311 = vld [vmem:[#allocation8 + $0x28] sm:$0xf]
        %v312 = vld [vmem:[#allocation8 + $0x2c] sm:$0xf]
        %v313 = vld [vmem:[#allocation8 + $0x30] sm:$0xf]
        %v314 = vld [vmem:[#allocation8 + $0x34] sm:$0xf]
        %v315 = vld [vmem:[#allocation8 + $0x38] sm:$0xf]
        %v316 = vld [vmem:[#allocation8 + $0x3c] sm:$0xf]
        %v333 = vunpack.c.l.b16 %v301
        %v334 = vunpack.c.l.b16 %v302
        %v335 = vunpack.c.l.b16 %v303
        %v336 = vunpack.c.l.b16 %v304
        %v337 = vunpack.c.l.b16 %v305
        %v338 = vunpack.c.l.b16 %v306
        %v339 = vunpack.c.l.b16 %v307
        %v340 = vunpack.c.l.b16 %v308
        %v341 = vunpack.c.l.b16 %v309
        %v342 = vunpack.c.l.b16 %v310
        %v343 = vunpack.c.l.b16 %v311
        %v344 = vunpack.c.l.b16 %v312
        %v345 = vunpack.c.l.b16 %v313
        %v346 = vunpack.c.l.b16 %v314
        %v347 = vunpack.c.l.b16 %v315
        %v348 = vunpack.c.l.b16 %v316
        %v349 = vpack.c.b16 %v334, %v333
        %v350 = vpack.c.b16 %v336, %v335
        %v351 = vpack.c.b16 %v338, %v337
        %v352 = vpack.c.b16 %v340, %v339
        %v353 = vpack.c.b16 %v342, %v341
        %v354 = vpack.c.b16 %v344, %v343
        %v355 = vpack.c.b16 %v346, %v345
        %v356 = vpack.c.b16 %v348, %v347
        %365 = vmatprep.subr.bf16.mxu0 0
        %366 = vmatpush1.bf16.msra.mxu0 %v349
        %367 = vmatprep.subr.bf16.mxu0 0
        %368 = vmatpush1.bf16.msra.mxu0 %v350
        %369 = vmatprep.subr.bf16.mxu0 0
        %370 = vmatpush1.bf16.msra.mxu0 %v351
        %371 = vmatprep.subr.bf16.mxu0 0
        %372 = vmatpush1.bf16.msra.mxu0 %v352
        %373 = vmatprep.subr.bf16.mxu0 0
        %374 = vmatpush1.bf16.msra.mxu0 %v353
        %375 = vmatprep.subr.bf16.mxu0 0
        %376 = vmatpush1.bf16.msra.mxu0 %v354
        %377 = vmatprep.subr.bf16.mxu0 0
        %378 = vmatpush1.bf16.msra.mxu0 %v355
        %379 = vmatprep.subr.bf16.mxu0 0
        %380 = vmatpush1.bf16.msra.mxu0 %v356
        %381 = vmatprep.subr.bf16.mxu0 0
        %382 = vmatpush1.bf16.msra.mxu0 0
        %383 = vmatprep.subr.bf16.mxu0 0
        %384 = vmatpush1.bf16.msra.mxu0 0
        %385 = vmatprep.subr.bf16.mxu0 0
        %386 = vmatpush1.bf16.msra.mxu0 0
        %387 = vmatprep.subr.bf16.mxu0 0
        %388 = vmatpush1.bf16.msra.mxu0 0
        %389 = vmatprep.subr.bf16.mxu0 0
        %390 = vmatpush1.bf16.msra.mxu0 0
        %391 = vmatprep.subr.bf16.mxu0 0
        %392 = vmatpush1.bf16.msra.mxu0 0
        %393 = vmatprep.subr.bf16.mxu0 0
        %394 = vmatpush1.bf16.msra.mxu0 0
        %395 = vmatprep.subr.bf16.mxu0 0
        %396 = vmatpush1.bf16.msra.mxu0 0
        %397 = vmatprep.mubr.bf16.mxu0 0
        %398 = vmatmul.mubr.bf16.gmra.mrb[0].mxu0 %v300
        %v399 = vpop.f32.mrb[0].mxu0
        %v400 = vadd.f32 0.0, %v399
        %v401 = vpop.f32.mrb[0].mxu0
        %v402 = vpop.f32.mrb[0].mxu0
        %v403 = vpop.f32.mrb[0].mxu0
        %404 = vdwg.mxu0
        %v405 = vld [vmem:[%s2] sm:$0x1]
        %v406 = vld [vmem:[#allocation4] sm:$0x1]
        %v407 = vrsqrt.pop %v299
        %v408 = vmul.f32 %v299, %v407
        %vm409 = vcmp.eq.f32.partialorder %v299, inf
        %v410 = vsel %vm409, %v299, %v408
        %vm411 = vcmp.eq.f32.partialorder %v299, 0.0
        %v412 = vand.u32 %v299, 2147483648
        %v413 = vsel %vm411, %v412, %v410
        %v414 = vmax.f32 %v413, 1e-15
        %v415 = vmul.f32 %v400, %v400
        %416 = vadd.xlane.f32.xlu0 %v415
        %v417 = vpop.xlane.xlu0 %416
        %v418 = vrsqrt.pop %v417
        %v419 = vmul.f32 %v417, %v418
        %vm420 = vcmp.eq.f32.partialorder %v417, inf
        %v421 = vsel %vm420, %v417, %v419
        %vm422 = vcmp.eq.f32.partialorder %v417, 0.0
        %v423 = vand.u32 %v417, 2147483648
        %v424 = vsel %vm422, %v423, %v421
        %v425 = vmax.f32 %v424, 1e-15
        %v426 = vand.u32 2147483647, %v400
        %427 = vmax.xlane.f32.xlu0 %v426
        %v428 = vpop.xlane.xlu0 %427
        %vm429 = vcmp.eq.f32.partialorder %v428, 0.0
        %v430 = vrcp.pop %v414
        %v431 = vmul.f32 %v425, %v430
        %v432 = vmax.f32 %v414, -0.99999
        %v433 = vmin.f32 %v432, 0.99999
        %v434 = vadd.f32 %v433, 1.0
        %v435 = vlog2.pop %v434
        %v436 = vmul.f32 %v435, 0.6931472
        %v437 = vmul.f32 -0.5, %v433
        %v438 = vadd.f32 %v437, 1.0
        %v439 = vmul.f32 %v438, %v433
        %v440 = vand.u32 2147483647, %v433
        %vm441 = vcmp.lt.f32.partialorder %v440, 0.0004427343
        %v442 = vsel %vm441, %v439, %v436
        %v443 = vsub.f32 0.0, %v433
        %v444 = vadd.f32 %v443, 1.0
        %v445 = vlog2.pop %v444
        %v446 = vmul.f32 %v445, 0.6931472
        %v447 = vmul.f32 -0.5, %v443
        %v448 = vadd.f32 %v447, 1.0
        %v449 = vmul.f32 %v448, %v443
        %v450 = vand.u32 2147483647, %v443
        %vm451 = vcmp.lt.f32.partialorder %v450, 0.0004427343
        %v452 = vsel %vm451, %v449, %v446
        %v453 = vsub.f32 %v442, %v452
        %v454 = vmul.f32 %v453, 0.5
        %v455 = vmul.f32 %v431, %v454
        %v456 = vtanh.pop %v455
        %v457 = vrcp.pop %v425
        %v458 = vmul.f32 %v456, %v457
        %v459 = vsel %vm429, 0.0, %v458
        %v460 = vmul.f32 %v456, %v456
        %v461 = vsel %vm429, 0.0, %v460
        %v462 = vld [vmem:[#allocation10] sm:$0xff]
        %v463 = vld [vmem:[#allocation10 + $0x8] sm:$0xff]
        %v464 = vld [vmem:[#allocation10 + $0x10] sm:$0xff]
        %v465 = vld [vmem:[#allocation10 + $0x18] sm:$0xff]
        %v466 = vld [vmem:[#allocation10 + $0x20] sm:$0xff]
        %v467 = vld [vmem:[#allocation10 + $0x28] sm:$0xff]
        %v468 = vld [vmem:[#allocation10 + $0x30] sm:$0xff]
        %v469 = vld [vmem:[#allocation10 + $0x38] sm:$0xff]
        %v470 = vld [vmem:[#allocation10 + $0x40] sm:$0xff]
        %v471 = vld [vmem:[#allocation10 + $0x48] sm:$0xff]
        %v472 = vld [vmem:[#allocation10 + $0x50] sm:$0xff]
        %v473 = vld [vmem:[#allocation10 + $0x58] sm:$0xff]
        %v474 = vld [vmem:[#allocation10 + $0x60] sm:$0xff]
        %v475 = vld [vmem:[#allocation10 + $0x68] sm:$0xff]
        %v476 = vld [vmem:[#allocation10 + $0x70] sm:$0xff]
        %v477 = vld [vmem:[#allocation10 + $0x78] sm:$0xff]
        %478 = vmatprep.subr.mxu0 0.0
        %479 = vmatpush1.msra.mxu0 %v462
        %480 = vmatprep.subr.mxu0 0.0
        %481 = vmatpush1.msra.mxu0 %v463
        %482 = vmatprep.subr.mxu0 0.0
        %483 = vmatpush1.msra.mxu0 %v464
        %484 = vmatprep.subr.mxu0 0.0
        %485 = vmatpush1.msra.mxu0 %v465
        %486 = vmatprep.subr.mxu0 0.0
        %487 = vmatpush1.msra.mxu0 %v466
        %488 = vmatprep.subr.mxu0 0.0
        %489 = vmatpush1.msra.mxu0 %v467
        %490 = vmatprep.subr.mxu0 0.0
        %491 = vmatpush1.msra.mxu0 %v468
        %492 = vmatprep.subr.mxu0 0.0
        %493 = vmatpush1.msra.mxu0 %v469
        %494 = vmatprep.subr.mxu0 0.0
        %495 = vmatpush1.msra.mxu0 %v470
        %496 = vmatprep.subr.mxu0 0.0
        %497 = vmatpush1.msra.mxu0 %v471
        %498 = vmatprep.subr.mxu0 0.0
        %499 = vmatpush1.msra.mxu0 %v472
        %500 = vmatprep.subr.mxu0 0.0
        %501 = vmatpush1.msra.mxu0 %v473
        %502 = vmatprep.subr.mxu0 0.0
        %503 = vmatpush1.msra.mxu0 %v474
        %504 = vmatprep.subr.mxu0 0.0
        %505 = vmatpush1.msra.mxu0 %v475
        %506 = vmatprep.subr.mxu0 0.0
        %507 = vmatpush1.msra.mxu0 %v476
        %508 = vmatprep.subr.mxu0 0.0
        %509 = vmatpush1.msra.mxu0 %v477
        %510 = vmatprep.subr.mxu0 0.0
        %511 = vmatpush1.msra.mxu0 0.0
        %512 = vmatprep.subr.mxu0 0.0
        %513 = vmatpush1.msra.mxu0 0.0
        %514 = vmatprep.subr.mxu0 0.0
        %515 = vmatpush1.msra.mxu0 0.0
        %516 = vmatprep.subr.mxu0 0.0
        %517 = vmatpush1.msra.mxu0 0.0
        %518 = vmatprep.subr.mxu0 0.0
        %519 = vmatpush1.msra.mxu0 0.0
        %520 = vmatprep.subr.mxu0 0.0
        %521 = vmatpush1.msra.mxu0 0.0
        %522 = vmatprep.subr.mxu0 0.0
        %523 = vmatpush1.msra.mxu0 0.0
        %524 = vmatprep.subr.mxu0 0.0
        %525 = vmatpush1.msra.mxu0 0.0
        %526 = vmatprep.subr.mxu0 0.0
        %527 = vmatpush1.msra.mxu0 0.0
        %528 = vmatprep.subr.mxu0 0.0
        %529 = vmatpush1.msra.mxu0 0.0
        %530 = vmatprep.subr.mxu0 0.0
        %531 = vmatpush1.msra.mxu0 0.0
        %532 = vmatprep.subr.mxu0 0.0
        %533 = vmatpush1.msra.mxu0 0.0
        %534 = vmatprep.subr.mxu0 0.0
        %535 = vmatpush1.msra.mxu0 0.0
        %536 = vmatprep.subr.mxu0 0.0
        %537 = vmatpush1.msra.mxu0 0.0
        %538 = vmatprep.subr.mxu0 0.0
        %539 = vmatpush1.msra.mxu0 0.0
        %540 = vmatprep.subr.mxu0 0.0
        %541 = vmatpush1.msra.mxu0 0.0
        %542 = vmatprep.mubr.f32.mxu0 0.0
        %543 = vmatmul.mubr.f32.gmra.mrb[0].mxu0 %v400
        %v544 = vpop.f32.mrb[0].mxu0
        %v545 = vadd.f32 0.0, %v544
        %v546 = vpop.f32.mrb[0].mxu0
        %547 = vdwg.mxu0
        %v548 = vmul.f32 %v459, %v545
        %v549 = vmul.f32 %v548, 2.0
        %v550 = vadd.f32 %v549, 1.0
        %v552 = vlaneseq
        %v553 = vshrl.u32 %v552, 7
        %v554 = vsub.s32 0, %v553
        %v555 = vrot.slane %v406, %v554
        %v557 = vadd.f32 %v550, %v555
        %v558 = vsub.f32 1.0, %v461
        %v559 = vmul.f32 %v461, %v555
        %v560 = vadd.f32 %v550, %v559
        %v561 = vmax.f32 %v560, 1e-15
        %v562 = vrcp.pop %v561
        %v563 = vmul.f32 %v557, %v459
        %v564 = vmul.f32 %v563, %v562
        %v565 = vmul.f32 %v558, %v562
        %v566 = vmul.f32 %v564, %v564
        %v567 = vmul.f32 %v566, %v417
        %v568 = vmul.f32 %v564, 2.0
        %v569 = vmul.f32 %v568, %v565
        %v570 = vmul.f32 %v569, %v545
        %v571 = vadd.f32 %v567, %v570
        %v572 = vmul.f32 %v565, %v565
        %v573 = vmul.f32 %v572, %v555
        %v574 = vadd.f32 %v571, %v573
        %v575 = vmax.f32 %v574, 0.0
        %v576 = vrsqrt.pop %v575
        %v577 = vmul.f32 %v575, %v576
        %vm578 = vcmp.eq.f32.partialorder %v575, inf
        %v579 = vsel %vm578, %v575, %v577
        %vm580 = vcmp.eq.f32.partialorder %v575, 0.0
        %v581 = vand.u32 %v575, 2147483648
        %v582 = vsel %vm580, %v581, %v579
        %v583 = vmax.f32 %v582, 1e-15
        %vm584 = vcmp.gt.f32.partialorder %v583, 0.996
        %v585 = vrcp.pop %v583
        %v586 = vmul.f32 0.996, %v585
        %v587 = vsel %vm584, %v586, 1.0
        %v588 = vmul.f32 %v587, %v564
        %v589 = vmul.f32 %v587, %v565
        %591 = vset.pattern.permute.xlu0 0
        %592 = vperm.xlu0 %591, %v588
        %v593 = vpop.permute.xlu0 %592
        %v595 = vmul.f32 %v593, %v400
        %597 = vset.pattern.permute.xlu0 0
        %598 = vperm.xlu0 %597, %v589
        %v599 = vpop.permute.xlu0 %598
        %v602 = vlaneseq
        %v603 = vshrl.u32 %v602, 7
        %v604 = vsub.s32 0, %v603
        %v605 = vrot.slane %v405, %v604
        %v607 = vmul.f32 %v599, %v605
        %v608 = vadd.f32 %v595, %v607
        %609 = vst [vmem:[%s293] sm:$0xff] %v608
        %s610 = sand.u32 %s162, 1
        %s611 = scalar_lea.sflag [#allocation7], %s610
        %s612 = sand.u32 %s162, 1
        %s613 = smul.addr %s612, 8
        %s614 = scalar_lea.vmem [#allocation11], %s613
        // Predicated region
        $region53: #{tpu_custom_call.1} parent=39 // pred_check
          %p615 = pneg %p172
        $region54: #{tpu_custom_call.1} parent=39 // pred_check_branch
          %617 = sbr.rel (%p615) target = $region56
        $region55: #{tpu_custom_call.1} parent=39 // pred_region
          %s619 = ssub.s32 128, 128
          %620 = vsyncadd %s611, %s619
          %s621 = smul.addr %s29, 128
          %s622 = scalar_lea.hbm %s5, %s621
          %s624 = sshll.u32 %s614, 4
          %s625 = int_to_ptr.vmem [resolvable:$true] %s624
          %627 = dma.vmem_to_hbm [thread:$0]  %s625, 128, %s622, %s611
        $region56: #{tpu_custom_call.1} parent=39 // pred_fallthru
          _
      $region40: #{tpu_custom_call.1} parent=5 // pred_fallthru
        _
      %p628 = scmp.le.s32.totalorder 2, %s20
      // Predicated region
      $region57: #{tpu_custom_call.1} parent=5 // pred_check
        %p629 = pneg %p628
      $region58: #{tpu_custom_call.1} parent=5 // pred_check_branch
        %631 = sbr.rel (%p629) target = $region60
      $region59: #{tpu_custom_call.1} parent=5 // pred_region
        %s632 = ssub.s32 %s20, 2
        // Predicated region
        $region61: #{tpu_custom_call.1} parent=59 // pred_check
          %p633 = pneg %p178
        $region62: #{tpu_custom_call.1} parent=59 // pred_check_branch
          %635 = sbr.rel (%p633) target = $region64
        $region63: #{tpu_custom_call.1} parent=59 // pred_region
          %s636 = sand.u32 %s163, 1
          %s637 = scalar_lea.sflag [#allocation7], %s636
          %s638 = sand.u32 %s163, 1
          %s639 = smul.addr %s638, 8
          %s640 = scalar_lea.vmem [#allocation11], %s639
          %641 = dma.done %s637, 128
        $region64: #{tpu_custom_call.1} parent=59 // pred_fallthru
          _
      $region60: #{tpu_custom_call.1} parent=5 // pred_fallthru
        _
    $region6: #{tpu_custom_call.1} parent=1 // loop_footer
      %s24 = sadd.s32 1, %s20
    $region7: #{tpu_custom_call.1} parent=1 // loop_footer_branch
      %19 = sbr.rel target = $region3
    $region8: #{tpu_custom_call.1} parent=1 // loop_exit
      _
    %642 = vsyncpa [#allocation6], 1
    %s643 = scalar_lea.sflag [#allocation6], 1
    %644 = vsyncpa %s643, 1
    %645 = vsyncpa [#allocation9], 1
    %646 = vsyncpa [#allocation7], 1
    %s647 = scalar_lea.sflag [#allocation7], 1
    %648 = vsyncpa %s647, 1

// kernel: tpu_custom_call.1
$region0: #{tpu_custom_call.1}
  #allocation0 [shape = 'u32[]', space=smem, size = 0x4, offset = 0x4, fixed_abs, tag = 'smem constant byte address 0x4 - core index']
  #allocation1 [shape = 'u32[144,128]{1,0:T(1,128)}', space=vmem, size = 0x12000, scoped, tag = 'internal scratch']
  #allocation2 [shape = 'f32[8,128]{1,0:T(8,128)}', space=vmem, size = 0x1000, scoped, tag = 'scratch operand']
  #allocation3 [shape = 'f32[8,1]{1,0:T(8,128)}', space=vmem, size = 0x1000, scoped, tag = 'scratch operand']
  #allocation4 [shape = 'f32[1,1]{1,0:T(1,128)S(1)}', space=vmem, size = 0x200, scoped, tag = 'scoped memory for tpu_custom_call.1']
  %s0 = inlined_call_operand.hbm [shape: f32[16,128], index: 0, kind: input, shape index: {}]
  %s1 = inlined_call_operand.hbm [shape: bf16[128,128], index: 1, kind: input, shape index: {}]
  %s2 = inlined_call_operand.vmem [shape: f32[1,128], index: 2, kind: input, shape index: {}]
  %s3 = inlined_call_operand.hbm [shape: f32[128,128], index: 3, kind: input, shape index: {}]
  %s4 = inlined_call_operand.<no memory space> [shape: f32[1,1], index: 4, kind: input, shape index: {}]
  %s5 = inlined_call_operand.hbm [shape: f32[16,128], index: 5, kind: output, shape index: {}]
  %s6 = sld [smem:[#allocation0]]
  $region65: #{tpu_custom_call.1} parent=0
    _
  %s8 = ssub.s32 1, %s6
  %s9 = scalar_select 0, %s8, %s6
  %v10 = vstv %s4
  %11 = vst [vmem:[#allocation4] sm:$0x1] %v10
  $region1: #{tpu_custom_call.1} parent=0
    #allocation5 [shape = 'u8[8192]{0}', space=vmem, size = 0x2000, scoped, tag = 'input window, operand 0']
    #allocation6 [shape = 's32[2]{0}', space=sflag, size = 0x8, scoped, tag = 'scoped memory for tpu_custom_call.1']
    #allocation7 [shape = 's32[2]{0}', space=sflag, size = 0x8, scoped, tag = 'scoped memory for tpu_custom_call.1']
    #allocation8 [shape = 'u8[32768]{0}', space=vmem, size = 0x8000, scoped, tag = 'input window, operand 1, single buffered']
    #allocation9 [shape = 's32[1]{0}', space=sflag, size = 0x4, scoped, tag = 'scoped memory for tpu_custom_call.1']
    #allocation10 [shape = 'u8[65536]{0}', space=vmem, size = 0x10000, scoped, tag = 'input window, operand 3, single buffered']
    #allocation11 [shape = 'u8[8192]{0}', space=vmem, size = 0x2000, scoped, tag = 'output window, operand 0']
    %12 = vsyncpa [#allocation6], 0
    %s13 = scalar_lea.sflag [#allocation6], 1
    %14 = vsyncpa %s13, 0
    %15 = vsyncpa [#allocation9], 0
    %16 = vsyncpa [#allocation7], 0
    %s17 = scalar_lea.sflag [#allocation7], 1
    %18 = vsyncpa %s17, 0
    loop: start=0, step=1, limit=4
    $region2: #{tpu_custom_call.1} parent=1 // loop_pre_header
      _
    $region3: #{tpu_custom_call.1} parent=1 // loop_header
      %s20 = sphi 0, %s24
      %p21 = scmp.ge.s32.totalorder %s20, 4
      %s27 = sphi 0, %s39
      %s28 = sphi 0, %s35
      %s29 = sphi 0, %s27
      %s30 = sphi 0, %s28
      %s31 = sphi 0, %s29
      %s32 = sphi 0, %s30
      %s44 = sphi 0, %s46
      %s47 = sphi 0, %s44
      %s48 = sphi 0, %s47
      %s64 = sphi 0, %s48
      %s70 = sphi 0, %s72
      %s73 = sphi 0, %s70
      %s74 = sphi 0, %s73
      %s90 = sphi 0, %s74
      %s94 = sphi 0, %s94
      %s96 = sphi 0, %s94
      %s97 = sphi 0, %s96
      %s111 = sphi 0, %s97
      %s115 = sphi 0, %s115
      %s117 = sphi 0, %s115
      %s118 = sphi 0, %s117
      %s132 = sphi 0, %s118
      %s136 = sphi 0, %s136
      %s138 = sphi 0, %s136
      %s139 = sphi 0, %s138
      %s153 = sphi 0, %s139
      %s159 = sphi 0, %s161
      %s162 = sphi 0, %s159
      %s163 = sphi 0, %s162
      %s179 = sphi 0, %s163
    $region4: #{tpu_custom_call.1} parent=1 // loop_header_branch
      %23 = sbr.rel (%p21) target = $region8
    $region5: #{tpu_custom_call.1} parent=1 // loop_body
      %s25 = ssub.s32 %s20, 1
      %s26 = ssub.s32 %s20, 2
      %s33 = sadd.s32 1, %s28
      %p34 = scmp.ge.s32.totalorder %s33, 1
      %s35 = scalar_select %p34, 0, %s33
      %s36 = sadd.s32 1, %s27
      %s37 = scalar_select %p34, %s36, %s27
      %p38 = scmp.ge.s32.totalorder %s37, 2
      %s39 = scalar_select %p38, 0, %s37
      %s40 = ssub.s32 %s27, %s39
      %s41 = ssub.s32 %s28, %s35
      %s42 = sor.u32 %s40, %s41
      %p43 = scmp.eq.s32.totalorder %s42, 0
      %s45 = sadd.s32 %s44, 1
      %s46 = scalar_select %p43, %s44, %s45
      %p49 = pneg %p43
      %p50 = scmp.eq.s32.totalorder %s20, 1
      %p51 = por %p49, %p50
      %p52 = scmp.ne.s32.totalorder %s44, %s47
      %p53 = scmp.eq.s32.totalorder %s20, 0
      %p54 = por %p52, %p53
      %p55 = scmp.ne.s32.totalorder %s44, %s47
      %p56 = scmp.eq.s32.totalorder %s25, 1
      %p57 = por %p55, %p56
      %p58 = scmp.ne.s32.totalorder %s47, %s48
      %p59 = scmp.eq.s32.totalorder %s25, 0
      %p60 = por %p58, %p59
      %p61 = scmp.ne.s32.totalorder %s47, %s48
      %p62 = scmp.eq.s32.totalorder %s26, 1
      %p63 = por %p61, %p62
      %p65 = scmp.ne.s32.totalorder %s48, %s64
      %p66 = scmp.eq.s32.totalorder %s26, 0
      %p67 = por %p65, %p66
      %s68 = ssub.s32 %s28, %s35
      %p69 = scmp.eq.s32.totalorder %s68, 0
      %s71 = sadd.s32 %s70, 1
      %s72 = scalar_select %p69, %s70, %s71
      %p75 = pneg %p69
      %p76 = scmp.eq.s32.totalorder %s20, 1
      %p77 = por %p75, %p76
      %p78 = scmp.ne.s32.totalorder %s70, %s73
      %p79 = scmp.eq.s32.totalorder %s20, 0
      %p80 = por %p78, %p79
      %p81 = scmp.ne.s32.totalorder %s70, %s73
      %p82 = scmp.eq.s32.totalorder %s25, 1
      %p83 = por %p81, %p82
      %p84 = scmp.ne.s32.totalorder %s73, %s74
      %p85 = scmp.eq.s32.totalorder %s25, 0
      %p86 = por %p84, %p85
      %p87 = scmp.ne.s32.totalorder %s73, %s74
      %p88 = scmp.eq.s32.totalorder %s26, 1
      %p89 = por %p87, %p88
      %p91 = scmp.ne.s32.totalorder %s74, %s90
      %p92 = scmp.eq.s32.totalorder %s26, 0
      %p93 = por %p91, %p92
      %s95 = sadd.s32 %s94, 1
      %p98 = scmp.eq.s32.totalorder %s20, 1
      %p99 = scmp.ne.s32.totalorder %s94, %s96
      %p100 = scmp.eq.s32.totalorder %s20, 0
      %p101 = por %p99, %p100
      %p102 = scmp.ne.s32.totalorder %s94, %s96
      %p103 = scmp.eq.s32.totalorder %s25, 1
      %p104 = por %p102, %p103
      %p105 = scmp.ne.s32.totalorder %s96, %s97
      %p106 = scmp.eq.s32.totalorder %s25, 0
      %p107 = por %p105, %p106
      %p108 = scmp.ne.s32.totalorder %s96, %s97
      %p109 = scmp.eq.s32.totalorder %s26, 1
      %p110 = por %p108, %p109
      %p112 = scmp.ne.s32.totalorder %s97, %s111
      %p113 = scmp.eq.s32.totalorder %s26, 0
      %p114 = por %p112, %p113
      %s116 = sadd.s32 %s115, 1
      %p119 = scmp.eq.s32.totalorder %s20, 1
      %p120 = scmp.ne.s32.totalorder %s115, %s117
      %p121 = scmp.eq.s32.totalorder %s20, 0
      %p122 = por %p120, %p121
      %p123 = scmp.ne.s32.totalorder %s115, %s117
      %p124 = scmp.eq.s32.totalorder %s25, 1
      %p125 = por %p123, %p124
      %p126 = scmp.ne.s32.totalorder %s117, %s118
      %p127 = scmp.eq.s32.totalorder %s25, 0
      %p128 = por %p126, %p127
      %p129 = scmp.ne.s32.totalorder %s117, %s118
      %p130 = scmp.eq.s32.totalorder %s26, 1
      %p131 = por %p129, %p130
      %p133 = scmp.ne.s32.totalorder %s118, %s132
      %p134 = scmp.eq.s32.totalorder %s26, 0
      %p135 = por %p133, %p134
      %s137 = sadd.s32 %s136, 1
      %p140 = scmp.eq.s32.totalorder %s20, 1
      %p141 = scmp.ne.s32.totalorder %s136, %s138
      %p142 = scmp.eq.s32.totalorder %s20, 0
      %p143 = por %p141, %p142
      %p144 = scmp.ne.s32.totalorder %s136, %s138
      %p145 = scmp.eq.s32.totalorder %s25, 1
      %p146 = por %p144, %p145
      %p147 = scmp.ne.s32.totalorder %s138, %s139
      %p148 = scmp.eq.s32.totalorder %s25, 0
      %p149 = por %p147, %p148
      %p150 = scmp.ne.s32.totalorder %s138, %s139
      %p151 = scmp.eq.s32.totalorder %s26, 1
      %p152 = por %p150, %p151
      %p154 = scmp.ne.s32.totalorder %s139, %s153
      %p155 = scmp.eq.s32.totalorder %s26, 0
      %p156 = por %p154, %p155
      %s157 = ssub.s32 %s27, %s39
      %p158 = scmp.eq.s32.totalorder %s157, 0
      %s160 = sadd.s32 %s159, 1
      %s161 = scalar_select %p158, %s159, %s160
      %p164 = pneg %p158
      %p165 = scmp.eq.s32.totalorder %s20, 1
      %p166 = por %p164, %p165
      %p167 = scmp.ne.s32.totalorder %s159, %s162
      %p168 = scmp.eq.s32.totalorder %s20, 0
      %p169 = por %p167, %p168
      %p170 = scmp.ne.s32.totalorder %s159, %s162
      %p171 = scmp.eq.s32.totalorder %s25, 1
      %p172 = por %p170, %p171
      %p173 = scmp.ne.s32.totalorder %s162, %s163
      %p174 = scmp.eq.s32.totalorder %s25, 0
      %p175 = por %p173, %p174
      %p176 = scmp.ne.s32.totalorder %s162, %s163
      %p177 = scmp.eq.s32.totalorder %s26, 1
      %p178 = por %p176, %p177
      %p180 = scmp.ne.s32.totalorder %s163, %s179
      %p181 = scmp.eq.s32.totalorder %s26, 0
      %p182 = por %p180, %p181
      %p183 = scmp.le.s32.totalorder 1, %s20
      %p184 = scmp.lt.s32.totalorder %s20, 3
      %p185 = pnand %p183, %p184
      %p186 = pneg %p185
      // Predicated region
      $region9: #{tpu_custom_call.1} parent=5 // pred_check
        _
      $region10: #{tpu_custom_call.1} parent=5 // pred_check_branch
        %188 = sbr.rel (%p185) target = $region12
      $region11: #{tpu_custom_call.1} parent=5 // pred_region
        %s189 = ssub.s32 %s20, 1
        // Predicated region
        $region13: #{tpu_custom_call.1} parent=11 // pred_check
          %p190 = pneg %p86
        $region14: #{tpu_custom_call.1} parent=11 // pred_check_branch
          %192 = sbr.rel (%p190) target = $region16
        $region15: #{tpu_custom_call.1} parent=11 // pred_region
          %s193 = smul.u32 16, %s30
          %s195 = ssub.s32 1024, 1024
          %196 = vsyncadd [#allocation9], %s195
          %s197 = smul.addr %s193, 64
          %s198 = scalar_lea.hbm %s1, %s197
          %s199 = sshll.u32 [#allocation8], 4
          %s200 = int_to_ptr.vmem [resolvable:$true] %s199
          %205 = dma.hbm_to_vmem [thread:$0]  %s198, 1024, %s200, [#allocation9], 64, 64, 4
        $region16: #{tpu_custom_call.1} parent=11 // pred_fallthru
          _
        // Predicated region
        $region17: #{tpu_custom_call.1} parent=11 // pred_check
          %p206 = pneg %p107
        $region18: #{tpu_custom_call.1} parent=11 // pred_check_branch
          %208 = sbr.rel (%p206) target = $region20
        $region19: #{tpu_custom_call.1} parent=11 // pred_region
          _
        $region20: #{tpu_custom_call.1} parent=11 // pred_fallthru
          _
        // Predicated region
        $region21: #{tpu_custom_call.1} parent=11 // pred_check
          %p209 = pneg %p128
        $region22: #{tpu_custom_call.1} parent=11 // pred_check_branch
          %211 = sbr.rel (%p209) target = $region24
        $region23: #{tpu_custom_call.1} parent=11 // pred_region
          %s213 = ssub.s32 2048, 2048
          %214 = vsyncadd [#allocation9], %s213
          %s215 = sshll.u32 [#allocation10], 4
          %s216 = int_to_ptr.vmem [resolvable:$true] %s215
          %221 = dma.hbm_to_vmem [thread:$0]  %s3, 2048, %s216, [#allocation9], 128, 128, 8
        $region24: #{tpu_custom_call.1} parent=11 // pred_fallthru
          _
        // Predicated region
        $region25: #{tpu_custom_call.1} parent=11 // pred_check
          %p222 = pneg %p149
        $region26: #{tpu_custom_call.1} parent=11 // pred_check_branch
          %224 = sbr.rel (%p222) target = $region28
        $region27: #{tpu_custom_call.1} parent=11 // pred_region
          _
        $region28: #{tpu_custom_call.1} parent=11 // pred_fallthru
          _
      $region12: #{tpu_custom_call.1} parent=5 // pred_fallthru
        _
      %p225 = scmp.lt.s32.totalorder %s20, 2
      // Predicated region
      $region29: #{tpu_custom_call.1} parent=5 // pred_check
        %p226 = pneg %p225
      $region30: #{tpu_custom_call.1} parent=5 // pred_check_branch
        %228 = sbr.rel (%p226) target = $region32
      $region31: #{tpu_custom_call.1} parent=5 // pred_region
        // Predicated region
        $region33: #{tpu_custom_call.1} parent=31 // pred_check
          %p229 = pneg %p54
        $region34: #{tpu_custom_call.1} parent=31 // pred_check_branch
          %231 = sbr.rel (%p229) target = $region36
        $region35: #{tpu_custom_call.1} parent=31 // pred_region
          %s232 = sand.u32 %s44, 1
          %s233 = scalar_lea.sflag [#allocation6], %s232
          %s234 = sand.u32 %s44, 1
          %s235 = smul.addr %s234, 8
          %s236 = scalar_lea.vmem [#allocation5], %s235
          %s238 = ssub.s32 128, 128
          %239 = vsyncadd %s233, %s238
          %s240 = sadd.s32 %s28, %s27
          %s241 = smul.addr %s240, 128
          %s242 = scalar_lea.hbm %s0, %s241
          %s244 = sshll.u32 %s236, 4
          %s245 = int_to_ptr.vmem [resolvable:$true] %s244
          %247 = dma.hbm_to_vmem [thread:$0]  %s242, 128, %s245, %s233
        $region36: #{tpu_custom_call.1} parent=31 // pred_fallthru
          _
      $region32: #{tpu_custom_call.1} parent=5 // pred_fallthru
        _
      %p248 = scmp.le.s32.totalorder 1, %s20
      %p249 = scmp.lt.s32.totalorder %s20, 3
      %p250 = pnand %p248, %p249
      %p251 = pneg %p250
      // Predicated region
      $region37: #{tpu_custom_call.1} parent=5 // pred_check
        _
      $region38: #{tpu_custom_call.1} parent=5 // pred_check_branch
        %253 = sbr.rel (%p250) target = $region40
      $region39: #{tpu_custom_call.1} parent=5 // pred_region
        %s254 = ssub.s32 %s20, 1
        %s255 = sand.u32 %s47, 1
        %s256 = scalar_lea.sflag [#allocation6], %s255
        %s257 = sand.u32 %s47, 1
        %s258 = smul.addr %s257, 8
        %s259 = scalar_lea.vmem [#allocation5], %s258
        // Predicated region
        $region41: #{tpu_custom_call.1} parent=39 // pred_check
          %p260 = pneg %p60
        $region42: #{tpu_custom_call.1} parent=39 // pred_check_branch
          %262 = sbr.rel (%p260) target = $region44
        $region43: #{tpu_custom_call.1} parent=39 // pred_region
          %263 = dma.done %s256, 128
        $region44: #{tpu_custom_call.1} parent=39 // pred_fallthru
          _
        // Predicated region
        $region45: #{tpu_custom_call.1} parent=39 // pred_check
          %p264 = pneg %p86
        $region46: #{tpu_custom_call.1} parent=39 // pred_check_branch
          %266 = sbr.rel (%p264) target = $region48
        $region47: #{tpu_custom_call.1} parent=39 // pred_region
          %267 = dma.done [#allocation9], 1024
        $region48: #{tpu_custom_call.1} parent=39 // pred_fallthru
          _
        // Predicated region
        $region49: #{tpu_custom_call.1} parent=39 // pred_check
          %p268 = pneg %p128
        $region50: #{tpu_custom_call.1} parent=39 // pred_check_branch
          %270 = sbr.rel (%p268) target = $region52
        $region51: #{tpu_custom_call.1} parent=39 // pred_region
          %271 = dma.done [#allocation9], 2048
        $region52: #{tpu_custom_call.1} parent=39 // pred_fallthru
          _
        %s272 = sand.u32 %s47, 1
        %s273 = scalar_lea.sflag [#allocation6], %s272
        %s274 = sand.u32 %s47, 1
        %s275 = smul.addr %s274, 8
        %s276 = scalar_lea.vmem [#allocation5], %s275
        %p277 = pneg %p60
        %p278 = pneg %p57
        %p279 = pneg %p86
        %p280 = pneg %p83
        %p281 = pneg %p107
        %p282 = pneg %p104
        %p283 = pneg %p128
        %p284 = pneg %p125
        %p285 = pneg %p149
        %p286 = pneg %p146
        %p287 = pneg %p175
        %p288 = pneg %p172
        %s289 = sand.u32 %s162, 1
        %s290 = scalar_lea.sflag [#allocation7], %s289
        %s291 = sand.u32 %s162, 1
        %s292 = smul.addr %s291, 8
        %s293 = scalar_lea.vmem [#allocation11], %s292
        %s294 = smul.u32 16, %s30
        %v296 = vld [vmem:[%s259] sm:$0xff]
        %v297 = vmul.f32 %v296, %v296
        %298 = vadd.xlane.f32.xlu0 %v297
        %v299 = vpop.xlane.xlu0 %298
        %v300 = vpack.c.bf16 %v296, %v296
        %v301 = vld [vmem:[#allocation8] sm:$0xf]
        %v302 = vld [vmem:[#allocation8 + $0x4] sm:$0xf]
        %v303 = vld [vmem:[#allocation8 + $0x8] sm:$0xf]
        %v304 = vld [vmem:[#allocation8 + $0xc] sm:$0xf]
        %v305 = vld [vmem:[#allocation8 + $0x10] sm:$0xf]
        %v306 = vld [vmem:[#allocation8 + $0x14] sm:$0xf]
        %v307 = vld [vmem:[#allocation8 + $0x18] sm:$0xf]
        %v308 = vld [vmem:[#allocation8 + $0x1c] sm:$0xf]
        %v309 = vld [vmem:[#allocation8 + $0x20] sm:$0xf]
        %v310 = vld [vmem:[#allocation8 + $0x24] sm:$0xf]
        %v311 = vld [vmem:[#allocation8 + $0x28] sm:$0xf]
        %v312 = vld [vmem:[#allocation8 + $0x2c] sm:$0xf]
        %v313 = vld [vmem:[#allocation8 + $0x30] sm:$0xf]
        %v314 = vld [vmem:[#allocation8 + $0x34] sm:$0xf]
        %v315 = vld [vmem:[#allocation8 + $0x38] sm:$0xf]
        %v316 = vld [vmem:[#allocation8 + $0x3c] sm:$0xf]
        %v333 = vunpack.c.l.b16 %v301
        %v334 = vunpack.c.l.b16 %v302
        %v335 = vunpack.c.l.b16 %v303
        %v336 = vunpack.c.l.b16 %v304
        %v337 = vunpack.c.l.b16 %v305
        %v338 = vunpack.c.l.b16 %v306
        %v339 = vunpack.c.l.b16 %v307
        %v340 = vunpack.c.l.b16 %v308
        %v341 = vunpack.c.l.b16 %v309
        %v342 = vunpack.c.l.b16 %v310
        %v343 = vunpack.c.l.b16 %v311
        %v344 = vunpack.c.l.b16 %v312
        %v345 = vunpack.c.l.b16 %v313
        %v346 = vunpack.c.l.b16 %v314
        %v347 = vunpack.c.l.b16 %v315
        %v348 = vunpack.c.l.b16 %v316
        %v349 = vpack.c.b16 %v334, %v333
        %v350 = vpack.c.b16 %v336, %v335
        %v351 = vpack.c.b16 %v338, %v337
        %v352 = vpack.c.b16 %v340, %v339
        %v353 = vpack.c.b16 %v342, %v341
        %v354 = vpack.c.b16 %v344, %v343
        %v355 = vpack.c.b16 %v346, %v345
        %v356 = vpack.c.b16 %v348, %v347
        %365 = vmatprep.subr.bf16.mxu0 0
        %366 = vmatpush1.bf16.msra.mxu0 %v349
        %367 = vmatprep.subr.bf16.mxu0 0
        %368 = vmatpush1.bf16.msra.mxu0 %v350
        %369 = vmatprep.subr.bf16.mxu0 0
        %370 = vmatpush1.bf16.msra.mxu0 %v351
        %371 = vmatprep.subr.bf16.mxu0 0
        %372 = vmatpush1.bf16.msra.mxu0 %v352
        %373 = vmatprep.subr.bf16.mxu0 0
        %374 = vmatpush1.bf16.msra.mxu0 %v353
        %375 = vmatprep.subr.bf16.mxu0 0
        %376 = vmatpush1.bf16.msra.mxu0 %v354
        %377 = vmatprep.subr.bf16.mxu0 0
        %378 = vmatpush1.bf16.msra.mxu0 %v355
        %379 = vmatprep.subr.bf16.mxu0 0
        %380 = vmatpush1.bf16.msra.mxu0 %v356
        %381 = vmatprep.subr.bf16.mxu0 0
        %382 = vmatpush1.bf16.msra.mxu0 0
        %383 = vmatprep.subr.bf16.mxu0 0
        %384 = vmatpush1.bf16.msra.mxu0 0
        %385 = vmatprep.subr.bf16.mxu0 0
        %386 = vmatpush1.bf16.msra.mxu0 0
        %387 = vmatprep.subr.bf16.mxu0 0
        %388 = vmatpush1.bf16.msra.mxu0 0
        %389 = vmatprep.subr.bf16.mxu0 0
        %390 = vmatpush1.bf16.msra.mxu0 0
        %391 = vmatprep.subr.bf16.mxu0 0
        %392 = vmatpush1.bf16.msra.mxu0 0
        %393 = vmatprep.subr.bf16.mxu0 0
        %394 = vmatpush1.bf16.msra.mxu0 0
        %395 = vmatprep.subr.bf16.mxu0 0
        %396 = vmatpush1.bf16.msra.mxu0 0
        %397 = vmatprep.mubr.bf16.mxu0 0
        %398 = vmatmul.mubr.bf16.gmra.mrb[0].mxu0 %v300
        %v399 = vpop.f32.mrb[0].mxu0
        %v400 = vadd.f32 0.0, %v399
        %v401 = vpop.f32.mrb[0].mxu0
        %v402 = vpop.f32.mrb[0].mxu0
        %v403 = vpop.f32.mrb[0].mxu0
        %404 = vdwg.mxu0
        %v405 = vld [vmem:[%s2] sm:$0x1]
        %v406 = vld [vmem:[#allocation4] sm:$0x1]
        %v407 = vrsqrt.pop %v299
        %v408 = vmul.f32 %v299, %v407
        %vm409 = vcmp.eq.f32.partialorder %v299, inf
        %v410 = vsel %vm409, %v299, %v408
        %vm411 = vcmp.eq.f32.partialorder %v299, 0.0
        %v412 = vand.u32 %v299, 2147483648
        %v413 = vsel %vm411, %v412, %v410
        %v414 = vmax.f32 %v413, 1e-15
        %v415 = vmul.f32 %v400, %v400
        %416 = vadd.xlane.f32.xlu0 %v415
        %v417 = vpop.xlane.xlu0 %416
        %v418 = vrsqrt.pop %v417
        %v419 = vmul.f32 %v417, %v418
        %vm420 = vcmp.eq.f32.partialorder %v417, inf
        %v421 = vsel %vm420, %v417, %v419
        %vm422 = vcmp.eq.f32.partialorder %v417, 0.0
        %v423 = vand.u32 %v417, 2147483648
        %v424 = vsel %vm422, %v423, %v421
        %v425 = vmax.f32 %v424, 1e-15
        %v426 = vand.u32 2147483647, %v400
        %427 = vmax.xlane.f32.xlu0 %v426
        %v428 = vpop.xlane.xlu0 %427
        %vm429 = vcmp.eq.f32.partialorder %v428, 0.0
        %v430 = vrcp.pop %v414
        %v431 = vmul.f32 %v425, %v430
        %v432 = vmax.f32 %v414, -0.99999
        %v433 = vmin.f32 %v432, 0.99999
        %v434 = vadd.f32 %v433, 1.0
        %v435 = vlog2.pop %v434
        %v436 = vmul.f32 %v435, 0.6931472
        %v437 = vmul.f32 -0.5, %v433
        %v438 = vadd.f32 %v437, 1.0
        %v439 = vmul.f32 %v438, %v433
        %v440 = vand.u32 2147483647, %v433
        %vm441 = vcmp.lt.f32.partialorder %v440, 0.0004427343
        %v442 = vsel %vm441, %v439, %v436
        %v443 = vsub.f32 0.0, %v433
        %v444 = vadd.f32 %v443, 1.0
        %v445 = vlog2.pop %v444
        %v446 = vmul.f32 %v445, 0.6931472
        %v447 = vmul.f32 -0.5, %v443
        %v448 = vadd.f32 %v447, 1.0
        %v449 = vmul.f32 %v448, %v443
        %v450 = vand.u32 2147483647, %v443
        %vm451 = vcmp.lt.f32.partialorder %v450, 0.0004427343
        %v452 = vsel %vm451, %v449, %v446
        %v453 = vsub.f32 %v442, %v452
        %v454 = vmul.f32 %v453, 0.5
        %v455 = vmul.f32 %v431, %v454
        %v456 = vtanh.pop %v455
        %v457 = vrcp.pop %v425
        %v458 = vmul.f32 %v456, %v457
        %v459 = vsel %vm429, 0.0, %v458
        %v460 = vmul.f32 %v456, %v456
        %v461 = vsel %vm429, 0.0, %v460
        %v462 = vld [vmem:[#allocation10] sm:$0xff]
        %v463 = vld [vmem:[#allocation10 + $0x8] sm:$0xff]
        %v464 = vld [vmem:[#allocation10 + $0x10] sm:$0xff]
        %v465 = vld [vmem:[#allocation10 + $0x18] sm:$0xff]
        %v466 = vld [vmem:[#allocation10 + $0x20] sm:$0xff]
        %v467 = vld [vmem:[#allocation10 + $0x28] sm:$0xff]
        %v468 = vld [vmem:[#allocation10 + $0x30] sm:$0xff]
        %v469 = vld [vmem:[#allocation10 + $0x38] sm:$0xff]
        %v470 = vld [vmem:[#allocation10 + $0x40] sm:$0xff]
        %v471 = vld [vmem:[#allocation10 + $0x48] sm:$0xff]
        %v472 = vld [vmem:[#allocation10 + $0x50] sm:$0xff]
        %v473 = vld [vmem:[#allocation10 + $0x58] sm:$0xff]
        %v474 = vld [vmem:[#allocation10 + $0x60] sm:$0xff]
        %v475 = vld [vmem:[#allocation10 + $0x68] sm:$0xff]
        %v476 = vld [vmem:[#allocation10 + $0x70] sm:$0xff]
        %v477 = vld [vmem:[#allocation10 + $0x78] sm:$0xff]
        %478 = vmatprep.subr.mxu0 0.0
        %479 = vmatpush1.msra.mxu0 %v462
        %480 = vmatprep.subr.mxu0 0.0
        %481 = vmatpush1.msra.mxu0 %v463
        %482 = vmatprep.subr.mxu0 0.0
        %483 = vmatpush1.msra.mxu0 %v464
        %484 = vmatprep.subr.mxu0 0.0
        %485 = vmatpush1.msra.mxu0 %v465
        %486 = vmatprep.subr.mxu0 0.0
        %487 = vmatpush1.msra.mxu0 %v466
        %488 = vmatprep.subr.mxu0 0.0
        %489 = vmatpush1.msra.mxu0 %v467
        %490 = vmatprep.subr.mxu0 0.0
        %491 = vmatpush1.msra.mxu0 %v468
        %492 = vmatprep.subr.mxu0 0.0
        %493 = vmatpush1.msra.mxu0 %v469
        %494 = vmatprep.subr.mxu0 0.0
        %495 = vmatpush1.msra.mxu0 %v470
        %496 = vmatprep.subr.mxu0 0.0
        %497 = vmatpush1.msra.mxu0 %v471
        %498 = vmatprep.subr.mxu0 0.0
        %499 = vmatpush1.msra.mxu0 %v472
        %500 = vmatprep.subr.mxu0 0.0
        %501 = vmatpush1.msra.mxu0 %v473
        %502 = vmatprep.subr.mxu0 0.0
        %503 = vmatpush1.msra.mxu0 %v474
        %504 = vmatprep.subr.mxu0 0.0
        %505 = vmatpush1.msra.mxu0 %v475
        %506 = vmatprep.subr.mxu0 0.0
        %507 = vmatpush1.msra.mxu0 %v476
        %508 = vmatprep.subr.mxu0 0.0
        %509 = vmatpush1.msra.mxu0 %v477
        %510 = vmatprep.subr.mxu0 0.0
        %511 = vmatpush1.msra.mxu0 0.0
        %512 = vmatprep.subr.mxu0 0.0
        %513 = vmatpush1.msra.mxu0 0.0
        %514 = vmatprep.subr.mxu0 0.0
        %515 = vmatpush1.msra.mxu0 0.0
        %516 = vmatprep.subr.mxu0 0.0
        %517 = vmatpush1.msra.mxu0 0.0
        %518 = vmatprep.subr.mxu0 0.0
        %519 = vmatpush1.msra.mxu0 0.0
        %520 = vmatprep.subr.mxu0 0.0
        %521 = vmatpush1.msra.mxu0 0.0
        %522 = vmatprep.subr.mxu0 0.0
        %523 = vmatpush1.msra.mxu0 0.0
        %524 = vmatprep.subr.mxu0 0.0
        %525 = vmatpush1.msra.mxu0 0.0
        %526 = vmatprep.subr.mxu0 0.0
        %527 = vmatpush1.msra.mxu0 0.0
        %528 = vmatprep.subr.mxu0 0.0
        %529 = vmatpush1.msra.mxu0 0.0
        %530 = vmatprep.subr.mxu0 0.0
        %531 = vmatpush1.msra.mxu0 0.0
        %532 = vmatprep.subr.mxu0 0.0
        %533 = vmatpush1.msra.mxu0 0.0
        %534 = vmatprep.subr.mxu0 0.0
        %535 = vmatpush1.msra.mxu0 0.0
        %536 = vmatprep.subr.mxu0 0.0
        %537 = vmatpush1.msra.mxu0 0.0
        %538 = vmatprep.subr.mxu0 0.0
        %539 = vmatpush1.msra.mxu0 0.0
        %540 = vmatprep.subr.mxu0 0.0
        %541 = vmatpush1.msra.mxu0 0.0
        %542 = vmatprep.mubr.f32.mxu0 0.0
        %543 = vmatmul.mubr.f32.gmra.mrb[0].mxu0 %v400
        %v544 = vpop.f32.mrb[0].mxu0
        %v545 = vadd.f32 0.0, %v544
        %v546 = vpop.f32.mrb[0].mxu0
        %547 = vdwg.mxu0
        %v548 = vmul.f32 %v459, %v545
        %v549 = vmul.f32 %v548, 2.0
        %v550 = vadd.f32 %v549, 1.0
        %v552 = vlaneseq
        %v553 = vshrl.u32 %v552, 7
        %v554 = vsub.s32 0, %v553
        %v555 = vrot.slane %v406, %v554
        %v557 = vadd.f32 %v550, %v555
        %v558 = vsub.f32 1.0, %v461
        %v559 = vmul.f32 %v461, %v555
        %v560 = vadd.f32 %v550, %v559
        %v561 = vmax.f32 %v560, 1e-15
        %v562 = vrcp.pop %v561
        %v563 = vmul.f32 %v557, %v459
        %v564 = vmul.f32 %v563, %v562
        %v565 = vmul.f32 %v558, %v562
        %v566 = vmul.f32 %v564, %v564
        %v567 = vmul.f32 %v566, %v417
        %v568 = vmul.f32 %v564, 2.0
        %v569 = vmul.f32 %v568, %v565
        %v570 = vmul.f32 %v569, %v545
        %v571 = vadd.f32 %v567, %v570
        %v572 = vmul.f32 %v565, %v565
        %v573 = vmul.f32 %v572, %v555
        %v574 = vadd.f32 %v571, %v573
        %v575 = vmax.f32 %v574, 0.0
        %v576 = vrsqrt.pop %v575
        %v577 = vmul.f32 %v575, %v576
        %vm578 = vcmp.eq.f32.partialorder %v575, inf
        %v579 = vsel %vm578, %v575, %v577
        %vm580 = vcmp.eq.f32.partialorder %v575, 0.0
        %v581 = vand.u32 %v575, 2147483648
        %v582 = vsel %vm580, %v581, %v579
        %v583 = vmax.f32 %v582, 1e-15
        %vm584 = vcmp.gt.f32.partialorder %v583, 0.996
        %v585 = vrcp.pop %v583
        %v586 = vmul.f32 0.996, %v585
        %v587 = vsel %vm584, %v586, 1.0
        %v588 = vmul.f32 %v587, %v564
        %v589 = vmul.f32 %v587, %v565
        %591 = vset.pattern.permute.xlu0 0
        %592 = vperm.xlu0 %591, %v588
        %v593 = vpop.permute.xlu0 %592
        %v595 = vmul.f32 %v593, %v400
        %597 = vset.pattern.permute.xlu0 0
        %598 = vperm.xlu0 %597, %v589
        %v599 = vpop.permute.xlu0 %598
        %v602 = vlaneseq
        %v603 = vshrl.u32 %v602, 7
        %v604 = vsub.s32 0, %v603
        %v605 = vrot.slane %v405, %v604
        %v607 = vmul.f32 %v599, %v605
        %v608 = vadd.f32 %v595, %v607
        %609 = vst [vmem:[%s293] sm:$0xff] %v608
        %s610 = sand.u32 %s162, 1
        %s611 = scalar_lea.sflag [#allocation7], %s610
        %s612 = sand.u32 %s162, 1
        %s613 = smul.addr %s612, 8
        %s614 = scalar_lea.vmem [#allocation11], %s613
        // Predicated region
        $region53: #{tpu_custom_call.1} parent=39 // pred_check
          %p615 = pneg %p172
        $region54: #{tpu_custom_call.1} parent=39 // pred_check_branch
          %617 = sbr.rel (%p615) target = $region56
        $region55: #{tpu_custom_call.1} parent=39 // pred_region
          %s619 = ssub.s32 128, 128
          %620 = vsyncadd %s611, %s619
          %s621 = smul.addr %s29, 128
          %s622 = scalar_lea.hbm %s5, %s621
          %s624 = sshll.u32 %s614, 4
          %s625 = int_to_ptr.vmem [resolvable:$true] %s624
          %627 = dma.vmem_to_hbm [thread:$0]  %s625, 128, %s622, %s611
        $region56: #{tpu_custom_call.1} parent=39 // pred_fallthru
          _
      $region40: #{tpu_custom_call.1} parent=5 // pred_fallthru
        _
      %p628 = scmp.le.s32.totalorder 2, %s20
      // Predicated region
      $region57: #{tpu_custom_call.1} parent=5 // pred_check
        %p629 = pneg %p628
      $region58: #{tpu_custom_call.1} parent=5 // pred_check_branch
        %631 = sbr.rel (%p629) target = $region60
      $region59: #{tpu_custom_call.1} parent=5 // pred_region
        %s632 = ssub.s32 %s20, 2
        // Predicated region
        $region61: #{tpu_custom_call.1} parent=59 // pred_check
          %p633 = pneg %p178
        $region62: #{tpu_custom_call.1} parent=59 // pred_check_branch
          %635 = sbr.rel (%p633) target = $region64
        $region63: #{tpu_custom_call.1} parent=59 // pred_region
          %s636 = sand.u32 %s163, 1
          %s637 = scalar_lea.sflag [#allocation7], %s636
          %s638 = sand.u32 %s163, 1
          %s639 = smul.addr %s638, 8
          %s640 = scalar_lea.vmem [#allocation11], %s639
          %641 = dma.done %s637, 128
        $region64: #{tpu_custom_call.1} parent=59 // pred_fallthru
          _
      $region60: #{tpu_custom_call.1} parent=5 // pred_fallthru
        _
    $region6: #{tpu_custom_call.1} parent=1 // loop_footer
      %s24 = sadd.s32 1, %s20
    $region7: #{tpu_custom_call.1} parent=1 // loop_footer_branch
      %19 = sbr.rel target = $region3
    $region8: #{tpu_custom_call.1} parent=1 // loop_exit
      _
    %642 = vsyncpa [#allocation6], 1
    %s643 = scalar_lea.sflag [#allocation6], 1
    %644 = vsyncpa %s643, 1
    %645 = vsyncpa [#allocation9], 1
    %646 = vsyncpa [#allocation7], 1
    %s647 = scalar_lea.sflag [#allocation7], 1
    %648 = vsyncpa %s647, 1

</llo_original>
